<compile_context>
chip_gen: v7x
topology: tpu7x:2x2x1
jax: 0.10.0
libtpu: 0.0.40
codegen_flags: <defaults>
</compile_context>

<pallas_src>
import functools

import jax
import jax.numpy as jnp
from jax import lax
from jax.experimental import pallas as pl
from jax.experimental.pallas import tpu as pltpu

EPS = 1e-5
SCAN_CHUNK = 8          # intra-kernel scan chunk (tunable, 8-32 reasonable)
# TODO retune per generation: <=56 MiB on v7x (64 MiB physical), ~100 MiB on v5e/v6e.
VMEM_LIMIT_BYTES = 48 * 1024 * 1024


def _silu(x):
    return x * (1.0 / (1.0 + jnp.exp(-x)))


def _chunk_size(L, target=SCAN_CHUNK):
    t = min(L, target)
    while L % t:
        t -= 1
    return t


def _pick_tile(dim, target):
    t = min(dim, target)
    while dim % t:
        t -= 1
    return t


def _full_spec(shape):
    nd = len(shape)
    return pl.BlockSpec(shape, lambda b: (0,) * nd)


# ---------------------------------------------------------------------------
# Fused per-layer kernel: residual add + RMSNorm + Mamba1 mixer
# one batch element per grid step
# ---------------------------------------------------------------------------
def mamba_block_kernel(T_C, h_ref, r_ref, nw_ref,
                       w_in_ref, conv_w_ref, conv_b_ref,
                       w_x_ref, dt_w_ref, dt_b_ref,
                       a_logT_ref, d_vec_ref, out_w_ref,
                       o_ref, res_ref,
                       dt_s, dtx_s, b_s, c_s, y_s, h_s):
    L, D = h_ref.shape
    K = conv_w_ref.shape[0]
    N, E = a_logT_ref.shape
    R = dt_w_ref.shape[0]

    # ---- fused residual-add + RMSNorm (f32, residual_in_fp32 semantics) ----
    r = h_ref[...] + r_ref[...]                                   # (L, D)
    res_ref[...] = r
    var = jnp.mean(r * r, axis=-1, keepdims=True)
    xn = (r * lax.rsqrt(var + EPS)) * nw_ref[...]

    # ---- fused in_proj: x and z in one bf16 matmul, sliced in VMEM ----
    xz = jnp.dot(xn.astype(jnp.bfloat16), w_in_ref[...],
                 preferred_element_type=jnp.float32)              # (L, 2E) f32
    x_in = xz[:, :E]
    z = xz[:, E:]

    # ---- causal depthwise conv1d: K shifted VPU MACs (no L^2 matmuls) ----
    acc = x_in * conv_w_ref[K - 1:K, :]                           # lag 0
    for s in range(1, K):                                         # lag s
        shifted = jnp.concatenate(
            [jnp.zeros((s, E), jnp.float32), x_in[:L - s, :]], axis=0)
        acc = acc + shifted * conv_w_ref[K - 1 - s:K - s, :]
    x_conv = _silu(acc + conv_b_ref[...])                         # (L, E) f32

    # ---- fused x_proj (dt | B | C) in one bf16 matmul ----
    xdbc = jnp.dot(x_conv.astype(jnp.bfloat16), w_x_ref[...],
                   preferred_element_type=jnp.float32)            # (L, R+2N)
    dt_low = xdbc[:, :R]
    B_mat = xdbc[:, R:R + N]
    C_mat = xdbc[:, R + N:R + 2 * N]

    # dt_proj + softplus (threshold 20, PyTorch semantics)
    dt = jnp.dot(dt_low.astype(jnp.bfloat16), dt_w_ref[...],
                 preferred_element_type=jnp.float32) + dt_b_ref[...]
    dt = jnp.where(dt > 20.0, dt, jnp.log(1.0 + jnp.exp(dt)))     # (L, E) f32

    dt_s[...] = dt
    dtx_s[...] = dt * x_conv
    b_s[...] = B_mat
    c_s[...] = C_mat

    A_T = -jnp.exp(a_logT_ref[...])                               # (N, E) f32

    # ---- chunked selective scan: state h is (N, E) in f32 ----
    h_s[...] = jnp.zeros((N, E), jnp.float32)

    @pl.loop(0, L // T_C)
    def _(c):
        t0 = pl.multiple_of(c * T_C, T_C)
        dt_c = dt_s[pl.ds(t0, T_C), :]                            # (T_C, E)
        dtx_c = dtx_s[pl.ds(t0, T_C), :]                          # (T_C, E)
        b_blk = b_s[pl.ds(t0, T_C), :]                            # (T_C, N)
        c_blk = c_s[pl.ds(t0, T_C), :]                            # (T_C, N)

        # batch the transcendental + outer-product work for the whole chunk
        dA_c = jnp.exp(dt_c[:, None, :] * A_T[None, :, :])        # (T_C, N, E)
        dBx_c = b_blk[:, :, None] * dtx_c[:, None, :]             # (T_C, N, E)
        c3 = c_blk[:, :, None]                                    # (T_C, N, 1)

        h = h_s[...]
        ys = []
        for t in range(T_C):                                      # short static unroll
            h = dA_c[t] * h + dBx_c[t]                            # VPU (N, E)
            ys.append(jnp.sum(c3[t] * h, axis=0, keepdims=True))  # sublane reduce
        h_s[...] = h
        y_s[pl.ds(t0, T_C), :] = jnp.concatenate(ys, axis=0)      # full-tile store

    # ---- skip connection, gate, out_proj ----
    y = y_s[...] + d_vec_ref[...] * x_conv
    y = y * _silu(z)
    o_ref[...] = jnp.dot(y.astype(jnp.bfloat16), out_w_ref[...],
                         preferred_element_type=jnp.float32)      # (L, D) f32


_W_KEYS = ['w_in', 'conv_w', 'conv_b', 'w_x', 'dt_w', 'dt_b',
           'A_logT', 'D_vec', 'out_w']


def mamba_block(h, residual, lp):
    B, L, D = h.shape
    N, E = lp['A_logT'].shape
    T_C = _chunk_size(L)
    kernel = functools.partial(mamba_block_kernel, T_C)
    # NOTE: weight BlockSpecs are grid-invariant; on v7x they could additionally be
    # single-buffered (pipeline_mode=pl.Buffered(1)) to halve their VMEM cost.
    return pl.pallas_call(
        kernel,
        out_shape=(jax.ShapeDtypeStruct((B, L, D), jnp.float32),   # hidden
                   jax.ShapeDtypeStruct((B, L, D), jnp.float32)),  # residual
        grid=(B,),
        in_specs=[pl.BlockSpec((None, L, D), lambda b: (b, 0, 0)),
                  pl.BlockSpec((None, L, D), lambda b: (b, 0, 0)),
                  pl.BlockSpec((1, D), lambda b: (0, 0))]
                 + [_full_spec(lp[k].shape) for k in _W_KEYS],
        out_specs=(pl.BlockSpec((None, L, D), lambda b: (b, 0, 0)),
                   pl.BlockSpec((None, L, D), lambda b: (b, 0, 0))),
        scratch_shapes=[pltpu.VMEM((L, E), jnp.float32),   # dt
                        pltpu.VMEM((L, E), jnp.float32),   # dt * x
                        pltpu.VMEM((L, N), jnp.float32),   # B
                        pltpu.VMEM((L, N), jnp.float32),   # C
                        pltpu.VMEM((L, E), jnp.float32),   # y
                        pltpu.VMEM((N, E), jnp.float32)],  # scan state
        compiler_params=pltpu.CompilerParams(
            dimension_semantics=("parallel",),
            vmem_limit_bytes=VMEM_LIMIT_BYTES),
    )(h, residual, lp['norm_w'], *[lp[k] for k in _W_KEYS])


# ---------------------------------------------------------------------------
# Final fused residual-add + RMSNorm (emits bf16 directly for the lm_head)
# ---------------------------------------------------------------------------
def final_norm_kernel(h_ref, r_ref, w_ref, o_ref):
    r = h_ref[...] + r_ref[...]
    var = jnp.mean(r * r, axis=-1, keepdims=True)
    o_ref[...] = (r * lax.rsqrt(var + EPS) * w_ref[...]).astype(o_ref.dtype)


def final_add_rmsnorm(h, r, w):
    B, L, D = h.shape
    return pl.pallas_call(
        final_norm_kernel,
        out_shape=jax.ShapeDtypeStruct((B, L, D), jnp.bfloat16),
        grid=(B,),
        in_specs=[pl.BlockSpec((None, L, D), lambda b: (b, 0, 0)),
                  pl.BlockSpec((None, L, D), lambda b: (b, 0, 0)),
                  pl.BlockSpec((1, D), lambda b: (0, 0))],
        out_specs=pl.BlockSpec((None, L, D), lambda b: (b, 0, 0)),
        compiler_params=pltpu.CompilerParams(dimension_semantics=("parallel",)),
    )(h, r, w)


# ---------------------------------------------------------------------------
# lm_head: tiled bf16 matmul with f32 VMEM accumulator (tied, pre-transposed W)
# ---------------------------------------------------------------------------
def lm_head_kernel(h_ref, w_ref, o_ref, acc_ref):
    @pl.when(pl.program_id(2) == 0)
    def _():
        acc_ref[...] = jnp.zeros_like(acc_ref)
    acc_ref[...] += jnp.dot(h_ref[...], w_ref[...],
                            preferred_element_type=jnp.float32)

    @pl.when(pl.program_id(2) == pl.num_programs(2) - 1)
    def _():
        o_ref[...] = acc_ref[...]


def lm_head(h2, w):
    M, D = h2.shape
    V = w.shape[1]
    tm = _pick_tile(M, 256)
    tn = _pick_tile(V, 512)   # multiple of 256 at real vocab sizes (v6e/v7x MXU width)
    tk = _pick_tile(D, 512)
    return pl.pallas_call(
        lm_head_kernel,
        out_shape=jax.ShapeDtypeStruct((M, V), jnp.float32),
        grid=(M // tm, V // tn, D // tk),
        in_specs=[pl.BlockSpec((tm, tk), lambda i, j, k: (i, k)),
                  pl.BlockSpec((tk, tn), lambda i, j, k: (k, j))],
        out_specs=pl.BlockSpec((tm, tn), lambda i, j, k: (i, j)),
        scratch_shapes=[pltpu.VMEM((tm, tn), jnp.float32)],
        compiler_params=pltpu.CompilerParams(
            dimension_semantics=("parallel", "parallel", "arbitrary"),
            vmem_limit_bytes=VMEM_LIMIT_BYTES),
    )(h2, w)


# ---------------------------------------------------------------------------
# Full forward
# ---------------------------------------------------------------------------
def mamba_lm_forward(params, input_ids):
    emb = params['embedding']                       # (V, D) f32
    B, L = input_ids.shape
    D = emb.shape[1]
    # TODO(synk): embedding gather kept in plain JAX glue (data-dependent row gather).
    h = jnp.take(emb, input_ids, axis=0)            # (B, L, D) f32
    residual = jnp.zeros_like(h)
    for lp in params['layers']:
        h, residual = mamba_block(h, residual, lp)
    hn = final_add_rmsnorm(h, residual, params['norm_f_w'])        # bf16
    logits = lm_head(hn.reshape(B * L, D), params['lm_head_w'])    # tied weights
    return logits.reshape(B, L, -1)


# ---------------------------------------------------------------------------
# Deterministic parameter init (synthetic). Matmul weights stored in bf16,
# fused (x|z) and (dt|B|C) projections, tied lm_head pre-transposed once.
# ---------------------------------------------------------------------------
def init_params(key, *, vocab_size, d_model, n_layer, d_state, d_conv, expand):
    d_inner = expand * d_model
    dt_rank = -(-d_model // 16)   # ceil(d_model / 16)
    keys = jax.random.split(key, 1 + n_layer)

    def nrm(k, shape, std=0.02):
        return std * jax.random.normal(k, shape, dtype=jnp.float32)

    emb = nrm(keys[0], (vocab_size, d_model))
    params = {
        'embedding': emb,
        'lm_head_w': emb.T.astype(jnp.bfloat16),     # tied + pre-transposed once
        'norm_f_w': jnp.ones((1, d_model), jnp.float32),
        'layers': [],
    }
    for i in range(n_layer):
        ks = jax.random.split(keys[1 + i], 10)
        w_in = jnp.concatenate([nrm(ks[0], (d_model, d_inner)),
                                nrm(ks[1], (d_model, d_inner))], axis=1)
        w_x = jnp.concatenate([nrm(ks[4], (d_inner, dt_rank)),
                               nrm(ks[5], (d_inner, d_state)),
                               nrm(ks[6], (d_inner, d_state))], axis=1)
        lp = {
            'norm_w': jnp.ones((1, d_model), jnp.float32),
            'w_in': w_in.astype(jnp.bfloat16),                       # (D, 2E)
            'conv_w': nrm(ks[2], (d_conv, d_inner), std=0.2),        # (K, E) f32
            'conv_b': nrm(ks[3], (1, d_inner), std=0.1),
            'w_x': w_x.astype(jnp.bfloat16),                         # (E, R+2N)
            'dt_w': nrm(ks[7], (dt_rank, d_inner), std=0.1).astype(jnp.bfloat16),
            'dt_b': nrm(ks[8], (1, d_inner), std=0.1),
            # A_log[e, n] = log(n + 1) (S4D-real init); stored transposed (N, E).
            'A_logT': jnp.log(jnp.broadcast_to(
                jnp.arange(1, d_state + 1, dtype=jnp.float32)[:, None],
                (d_state, d_inner))),
            'D_vec': jnp.ones((1, d_inner), jnp.float32),
            'out_w': nrm(ks[9], (d_inner, d_model)).astype(jnp.bfloat16),
        }
        params['layers'].append(lp)
    return params


# ---------------------------------------------------------------------------
# Pure-JAX reference (mirrors the kernel's bf16-matmul / f32-scan numerics)
# ---------------------------------------------------------------------------
def _bf16_dot(a, b):
    return jnp.dot(a.astype(jnp.bfloat16), b.astype(jnp.bfloat16),
                   preferred_element_type=jnp.float32)


def _ref_rmsnorm(x, w):
    var = jnp.mean(x * x, axis=-1, keepdims=True)
    return x * lax.rsqrt(var + EPS) * w[0]


def _ref_mixer(xn, lp):
    Bsz, L, D = xn.shape
    K = lp['conv_w'].shape[0]
    N, E = lp['A_logT'].shape
    R = lp['dt_w'].shape[0]
    xz = _bf16_dot(xn, lp['w_in'])
    x_in, z = xz[..., :E], xz[..., E:]
    pad = jnp.pad(x_in, ((0, 0), (K - 1, 0), (0, 0)))
    conv = sum(pad[:, k:k + L, :] * lp['conv_w'][k] for k in range(K))
    conv = _silu(conv + lp['conv_b'][0])
    xdbc = _bf16_dot(conv, lp['w_x'])
    dt_low = xdbc[..., :R]
    Bm = xdbc[..., R:R + N]
    Cm = xdbc[..., R + N:R + 2 * N]
    dt = _bf16_dot(dt_low, lp['dt_w']) + lp['dt_b'][0]
    dt = jnp.where(dt > 20.0, dt, jnp.log(1.0 + jnp.exp(dt)))
    A_T = -jnp.exp(lp['A_logT'])                    # (N, E)
    dtx = dt * conv

    def step(h, xs):
        dt_t, dtx_t, b_t, c_t = xs                  # (B,E),(B,E),(B,N),(B,N)
        dA = jnp.exp(dt_t[:, None, :] * A_T[None])
        h = dA * h + b_t[:, :, None] * dtx_t[:, None, :]
        y = jnp.einsum('bn,bne->be', c_t, h)
        return h, y

    h0 = jnp.zeros((Bsz, N, E), jnp.float32)
    _, ys = lax.scan(step, h0,
                     (dt.swapaxes(0, 1), dtx.swapaxes(0, 1),
                      Bm.swapaxes(0, 1), Cm.swapaxes(0, 1)))
    y = ys.swapaxes(0, 1) + lp['D_vec'][0] * conv
    y = y * _silu(z)
    return _bf16_dot(y, lp['out_w'])


def _ref_forward(params, input_ids):
    emb = params['embedding']
    h = emb[input_ids]
    residual = jnp.zeros_like(h)
    for lp in params['layers']:
        residual = h + residual
        h = _ref_mixer(_ref_rmsnorm(residual, lp['norm_w']), lp)
    hn = _ref_rmsnorm(h + residual, params['norm_f_w']).astype(jnp.bfloat16)
    B, L, D = hn.shape
    logits = jnp.dot(hn.reshape(B * L, D), params['lm_head_w'],
                     preferred_element_type=jnp.float32)
    return logits.reshape(B, L, -1)


if __name__ == "__main__":
    B, L = 2, 16
    d_model, n_layer = 32, 2
    vocab_size = 48            # already a multiple of pad_vocab_size_multiple=8
    d_state, d_conv, expand = 16, 4, 2

    key = jax.random.PRNGKey(0)
    pkey, ikey = jax.random.split(key)
    params = init_params(pkey, vocab_size=vocab_size, d_model=d_model,
                         n_layer=n_layer, d_state=d_state, d_conv=d_conv,
                         expand=expand)
    input_ids = jax.random.randint(ikey, (B, L), 0, vocab_size, dtype=jnp.int32)

    logits = jax.jit(mamba_lm_forward)(params, input_ids)
    jax.block_until_ready(logits)

    ref = _ref_forward(params, input_ids)
    assert logits.shape == (B, L, vocab_size)
    max_err = float(jnp.max(jnp.abs(logits - ref)))
    assert max_err < 1e-2, max_err
    print("KERNEL_OK")
</pallas_src>

<mosaic_0001>
module attributes {stable_mosaic.version = 11 : i64} {
  func.func @final_norm_kernel(%arg0: i32, %arg1: memref<1x16x32xf32, #tpu.memory_space<vmem>>, %arg2: memref<1x16x32xf32, #tpu.memory_space<vmem>>, %arg3: memref<1x32xf32, #tpu.memory_space<vmem>>, %arg4: memref<1x16x32xbf16, #tpu.memory_space<vmem>>) attributes {dimension_semantics = [#tpu.dimension_semantics<parallel>], iteration_bounds = array<i64: 2>, scalar_prefetch = 0 : i64, scratch_operands = 0 : i64, tpu.core_type = #tpu.core_type<tc>, window_params = [{transform_indices = @transform_0, window_bounds = array<i64: 1, 16, 32>}, {transform_indices = @transform_1, window_bounds = array<i64: 1, 16, 32>}, {pipeline_mode = #tpu.pipeline_mode<synchronous>, transform_indices = @transform_2, window_bounds = array<i64: 1, 32>}, {transform_indices = @transform_3, window_bounds = array<i64: 1, 16, 32>}]} {
    %c0 = arith.constant 0 : index
    %c0_0 = arith.constant 0 : index
    %c0_1 = arith.constant 0 : index
    %0 = vector.load %arg1[%c0, %c0_0, %c0_1] : memref<1x16x32xf32, #tpu.memory_space<vmem>>, vector<1x16x32xf32>
    %1 = vector.shape_cast %0 : vector<1x16x32xf32> to vector<16x32xf32>
    %c0_2 = arith.constant 0 : index
    %c0_3 = arith.constant 0 : index
    %c0_4 = arith.constant 0 : index
    %2 = vector.load %arg2[%c0_2, %c0_3, %c0_4] : memref<1x16x32xf32, #tpu.memory_space<vmem>>, vector<1x16x32xf32>
    %3 = vector.shape_cast %2 : vector<1x16x32xf32> to vector<16x32xf32>
    %4 = arith.addf %1, %3 : vector<16x32xf32>
    %5 = arith.mulf %4, %4 : vector<16x32xf32>
    %cst = arith.constant dense<0.000000e+00> : vector<16xf32>
    %6 = vector.multi_reduction <add>, %5, %cst [1] : vector<16x32xf32> to vector<16xf32>
    %7 = vector.shape_cast %6 : vector<16xf32> to vector<16x1xf32>
    %cst_5 = arith.constant 3.200000e+01 : f32
    %8 = vector.broadcast %cst_5 : f32 to vector<16x1xf32>
    %9 = arith.divf %7, %8 : vector<16x1xf32>
    %cst_6 = arith.constant 9.99999974E-6 : f32
    %10 = vector.broadcast %cst_6 : f32 to vector<16x1xf32>
    %11 = arith.addf %9, %10 : vector<16x1xf32>
    %12 = math.rsqrt %11 : vector<16x1xf32>
    %13 = vector.broadcast %12 : vector<16x1xf32> to vector<16x32xf32>
    %14 = arith.mulf %4, %13 : vector<16x32xf32>
    %c0_7 = arith.constant 0 : index
    %c0_8 = arith.constant 0 : index
    %15 = vector.load %arg3[%c0_7, %c0_8] : memref<1x32xf32, #tpu.memory_space<vmem>>, vector<1x32xf32>
    %16 = vector.broadcast %15 : vector<1x32xf32> to vector<16x32xf32>
    %17 = arith.mulf %14, %16 : vector<16x32xf32>
    %18 = arith.truncf %17 : vector<16x32xf32> to vector<16x32xbf16>
    %c0_9 = arith.constant 0 : index
    %c0_10 = arith.constant 0 : index
    %c0_11 = arith.constant 0 : index
    %19 = vector.load %arg4[%c0_9, %c0_10, %c0_11] : memref<1x16x32xbf16, #tpu.memory_space<vmem>>, vector<1x16x32xbf16>
    %20 = vector.shape_cast %19 : vector<1x16x32xbf16> to vector<16x32xbf16>
    %21 = vector.shape_cast %18 : vector<16x32xbf16> to vector<1x16x32xbf16>
    tpu.vector_store %arg4[%c0_9, %c0_10, %c0_11], %21 {strides = array<i32>} : memref<1x16x32xbf16, #tpu.memory_space<vmem>>, vector<1x16x32xbf16>,
    return
  }
  func.func @transform_0(%arg0: i32) -> (i32, i32, i32) {
    %c0_i32 = arith.constant 0 : i32
    %c0_i32_0 = arith.constant 0 : i32
    %c0_i32_1 = arith.constant 0 : i32
    return %arg0, %c0_i32, %c0_i32_0 : i32, i32, i32
  }
  func.func @transform_1(%arg0: i32) -> (i32, i32, i32) {
    %c0_i32 = arith.constant 0 : i32
    %c0_i32_0 = arith.constant 0 : i32
    %c0_i32_1 = arith.constant 0 : i32
    return %arg0, %c0_i32, %c0_i32_0 : i32, i32, i32
  }
  func.func @transform_2(%arg0: i32) -> (i32, i32) {
    %c0_i32 = arith.constant 0 : i32
    %c0_i32_0 = arith.constant 0 : i32
    %c0_i32_1 = arith.constant 0 : i32
    return %c0_i32, %c0_i32_0 : i32, i32
  }
  func.func @transform_3(%arg0: i32) -> (i32, i32, i32) {
    %c0_i32 = arith.constant 0 : i32
    %c0_i32_0 = arith.constant 0 : i32
    %c0_i32_1 = arith.constant 0 : i32
    return %arg0, %c0_i32, %c0_i32_0 : i32, i32, i32
  }
}

module attributes {stable_mosaic.version = 11 : i64} {
  func.func @lm_head_kernel(%arg0: i32, %arg1: i32, %arg2: i32, %arg3: memref<32x32xbf16, #tpu.memory_space<vmem>>, %arg4: memref<32x48xbf16, #tpu.memory_space<vmem>>, %arg5: memref<32x48xf32, #tpu.memory_space<vmem>>, %arg6: memref<32x48xf32, #tpu.memory_space<vmem>>) attributes {dimension_semantics = [#tpu.dimension_semantics<parallel>, #tpu.dimension_semantics<parallel>, #tpu.dimension_semantics<arbitrary>], iteration_bounds = array<i64: 1, 1, 1>, scalar_prefetch = 0 : i64, scratch_operands = 1 : i64, tpu.core_type = #tpu.core_type<tc>, window_params = [{transform_indices = @transform_0, window_bounds = array<i64: 32, 32>}, {transform_indices = @transform_1, window_bounds = array<i64: 32, 48>}, {transform_indices = @transform_2, window_bounds = array<i64: 32, 48>}]} {
    %c0_i32 = arith.constant 0 : i32
    %0 = arith.cmpi eq, %arg2, %c0_i32 : i32
    %1 = arith.extui %0 : i1 to i32
    %c0_i32_0 = arith.constant 0 : i32
    %2 = arith.cmpi ne, %1, %c0_i32_0 : i32
    scf.if %2 {
      %cst_10 = arith.constant 0.000000e+00 : f32
      %12 = vector.broadcast %cst_10 : f32 to vector<32x48xf32>
      %c0_11 = arith.constant 0 : index
      %c0_12 = arith.constant 0 : index
      %13 = vector.load %arg6[%c0_11, %c0_12] : memref<32x48xf32, #tpu.memory_space<vmem>>, vector<32x48xf32>
      tpu.vector_store %arg6[%c0_11, %c0_12], %12 {strides = array<i32>} : memref<32x48xf32, #tpu.memory_space<vmem>>, vector<32x48xf32>,
    } else {
    }
    %c0 = arith.constant 0 : index
    %c0_1 = arith.constant 0 : index
    %3 = vector.load %arg6[%c0, %c0_1] : memref<32x48xf32, #tpu.memory_space<vmem>>, vector<32x48xf32>
    %c0_2 = arith.constant 0 : index
    %c0_3 = arith.constant 0 : index
    %4 = vector.load %arg3[%c0_2, %c0_3] : memref<32x32xbf16, #tpu.memory_space<vmem>>, vector<32x32xbf16>
    %c0_4 = arith.constant 0 : index
    %c0_5 = arith.constant 0 : index
    %5 = vector.load %arg4[%c0_4, %c0_5] : memref<32x48xbf16, #tpu.memory_space<vmem>>, vector<32x48xbf16>
    %cst = arith.constant dense<0.000000e+00> : vector<32x48xf32>
    %6 = tpu.matmul %4, %5, %cst {dimension_numbers = #tpu.dot_dimension_numbers<[1], [0], [0], [1], [0, 0, 1, 1], [], []>} : vector<32x32xbf16>, vector<32x48xbf16>, vector<32x48xf32> -> vector<32x48xf32>
    %7 = arith.addf %3, %6 : vector<32x48xf32>
    %c0_6 = arith.constant 0 : index
    %c0_7 = arith.constant 0 : index
    %8 = vector.load %arg6[%c0_6, %c0_7] : memref<32x48xf32, #tpu.memory_space<vmem>>, vector<32x48xf32>
    tpu.vector_store %arg6[%c0_6, %c0_7], %7 {strides = array<i32>} : memref<32x48xf32, #tpu.memory_space<vmem>>, vector<32x48xf32>,
    %c0_i32_8 = arith.constant 0 : i32
    %9 = arith.cmpi eq, %arg2, %c0_i32_8 : i32
    %10 = arith.extui %9 : i1 to i32
    %c0_i32_9 = arith.constant 0 : i32
    %11 = arith.cmpi ne, %10, %c0_i32_9 : i32
    scf.if %11 {
      %c0_10 = arith.constant 0 : index
      %c0_11 = arith.constant 0 : index
      %12 = vector.load %arg6[%c0_10, %c0_11] : memref<32x48xf32, #tpu.memory_space<vmem>>, vector<32x48xf32>
      %c0_12 = arith.constant 0 : index
      %c0_13 = arith.constant 0 : index
      %13 = vector.load %arg5[%c0_12, %c0_13] : memref<32x48xf32, #tpu.memory_space<vmem>>, vector<32x48xf32>
      tpu.vector_store %arg5[%c0_12, %c0_13], %12 {strides = array<i32>} : memref<32x48xf32, #tpu.memory_space<vmem>>, vector<32x48xf32>,
    } else {
    }
    return
  }
  func.func @transform_0(%arg0: i32, %arg1: i32, %arg2: i32) -> (i32, i32) {
    %c0_i32 = arith.constant 0 : i32
    return %arg0, %arg2 : i32, i32
  }
  func.func @transform_1(%arg0: i32, %arg1: i32, %arg2: i32) -> (i32, i32) {
    %c0_i32 = arith.constant 0 : i32
    return %arg2, %arg1 : i32, i32
  }
  func.func @transform_2(%arg0: i32, %arg1: i32, %arg2: i32) -> (i32, i32) {
    %c0_i32 = arith.constant 0 : i32
    return %arg0, %arg1 : i32, i32
  }
}

module attributes {stable_mosaic.version = 11 : i64} {
  func.func @mamba_block_kernel(%arg0: i32, %arg1: memref<1x16x32xf32, #tpu.memory_space<vmem>>, %arg2: memref<1x16x32xf32, #tpu.memory_space<vmem>>, %arg3: memref<1x32xf32, #tpu.memory_space<vmem>>, %arg4: memref<32x128xbf16, #tpu.memory_space<vmem>>, %arg5: memref<4x64xf32, #tpu.memory_space<vmem>>, %arg6: memref<1x64xf32, #tpu.memory_space<vmem>>, %arg7: memref<64x34xbf16, #tpu.memory_space<vmem>>, %arg8: memref<2x64xbf16, #tpu.memory_space<vmem>>, %arg9: memref<1x64xf32, #tpu.memory_space<vmem>>, %arg10: memref<16x64xf32, #tpu.memory_space<vmem>>, %arg11: memref<1x64xf32, #tpu.memory_space<vmem>>, %arg12: memref<64x32xbf16, #tpu.memory_space<vmem>>, %arg13: memref<1x16x32xf32, #tpu.memory_space<vmem>>, %arg14: memref<1x16x32xf32, #tpu.memory_space<vmem>>, %arg15: memref<16x64xf32, #tpu.memory_space<vmem>>, %arg16: memref<16x64xf32, #tpu.memory_space<vmem>>, %arg17: memref<16x16xf32, #tpu.memory_space<vmem>>, %arg18: memref<16x16xf32, #tpu.memory_space<vmem>>, %arg19: memref<16x64xf32, #tpu.memory_space<vmem>>, %arg20: memref<16x64xf32, #tpu.memory_space<vmem>>) attributes {dimension_semantics = [#tpu.dimension_semantics<parallel>], iteration_bounds = array<i64: 2>, scalar_prefetch = 0 : i64, scratch_operands = 6 : i64, tpu.core_type = #tpu.core_type<tc>, window_params = [{transform_indices = @transform_0, window_bounds = array<i64: 1, 16, 32>}, {transform_indices = @transform_1, window_bounds = array<i64: 1, 16, 32>}, {pipeline_mode = #tpu.pipeline_mode<synchronous>, transform_indices = @transform_2, window_bounds = array<i64: 1, 32>}, {pipeline_mode = #tpu.pipeline_mode<synchronous>, transform_indices = @transform_3, window_bounds = array<i64: 32, 128>}, {pipeline_mode = #tpu.pipeline_mode<synchronous>, transform_indices = @transform_4, window_bounds = array<i64: 4, 64>}, {pipeline_mode = #tpu.pipeline_mode<synchronous>, transform_indices = @transform_5, window_bounds = array<i64: 1, 64>}, {pipeline_mode = #tpu.pipeline_mode<synchronous>, transform_indices = @transform_6, window_bounds = array<i64: 64, 34>}, {pipeline_mode = #tpu.pipeline_mode<synchronous>, transform_indices = @transform_7, window_bounds = array<i64: 2, 64>}, {pipeline_mode = #tpu.pipeline_mode<synchronous>, transform_indices = @transform_8, window_bounds = array<i64: 1, 64>}, {pipeline_mode = #tpu.pipeline_mode<synchronous>, transform_indices = @transform_9, window_bounds = array<i64: 16, 64>}, {pipeline_mode = #tpu.pipeline_mode<synchronous>, transform_indices = @transform_10, window_bounds = array<i64: 1, 64>}, {pipeline_mode = #tpu.pipeline_mode<synchronous>, transform_indices = @transform_11, window_bounds = array<i64: 64, 32>}, {transform_indices = @transform_12, window_bounds = array<i64: 1, 16, 32>}, {transform_indices = @transform_13, window_bounds = array<i64: 1, 16, 32>}]} {
    %c0 = arith.constant 0 : index
    %c0_0 = arith.constant 0 : index
    %c0_1 = arith.constant 0 : index
    %0 = vector.load %arg1[%c0, %c0_0, %c0_1] : memref<1x16x32xf32, #tpu.memory_space<vmem>>, vector<1x16x32xf32>
    %1 = vector.shape_cast %0 : vector<1x16x32xf32> to vector<16x32xf32>
    %c0_2 = arith.constant 0 : index
    %c0_3 = arith.constant 0 : index
    %c0_4 = arith.constant 0 : index
    %2 = vector.load %arg2[%c0_2, %c0_3, %c0_4] : memref<1x16x32xf32, #tpu.memory_space<vmem>>, vector<1x16x32xf32>
    %3 = vector.shape_cast %2 : vector<1x16x32xf32> to vector<16x32xf32>
    %4 = arith.addf %1, %3 : vector<16x32xf32>
    %c0_5 = arith.constant 0 : index
    %c0_6 = arith.constant 0 : index
    %c0_7 = arith.constant 0 : index
    %5 = vector.load %arg14[%c0_5, %c0_6, %c0_7] : memref<1x16x32xf32, #tpu.memory_space<vmem>>, vector<1x16x32xf32>
    %6 = vector.shape_cast %5 : vector<1x16x32xf32> to vector<16x32xf32>
    %7 = vector.shape_cast %4 : vector<16x32xf32> to vector<1x16x32xf32>
    tpu.vector_store %arg14[%c0_5, %c0_6, %c0_7], %7 {strides = array<i32>} : memref<1x16x32xf32, #tpu.memory_space<vmem>>, vector<1x16x32xf32>,
    %8 = arith.mulf %4, %4 : vector<16x32xf32>
    %cst = arith.constant dense<0.000000e+00> : vector<16xf32>
    %9 = vector.multi_reduction <add>, %8, %cst [1] : vector<16x32xf32> to vector<16xf32>
    %10 = vector.shape_cast %9 : vector<16xf32> to vector<16x1xf32>
    %cst_8 = arith.constant 3.200000e+01 : f32
    %11 = vector.broadcast %cst_8 : f32 to vector<16x1xf32>
    %12 = arith.divf %10, %11 : vector<16x1xf32>
    %cst_9 = arith.constant 9.99999974E-6 : f32
    %13 = vector.broadcast %cst_9 : f32 to vector<16x1xf32>
    %14 = arith.addf %12, %13 : vector<16x1xf32>
    %15 = math.rsqrt %14 : vector<16x1xf32>
    %16 = vector.broadcast %15 : vector<16x1xf32> to vector<16x32xf32>
    %17 = arith.mulf %4, %16 : vector<16x32xf32>
    %c0_10 = arith.constant 0 : index
    %c0_11 = arith.constant 0 : index
    %18 = vector.load %arg3[%c0_10, %c0_11] : memref<1x32xf32, #tpu.memory_space<vmem>>, vector<1x32xf32>
    %19 = vector.broadcast %18 : vector<1x32xf32> to vector<16x32xf32>
    %20 = arith.mulf %17, %19 : vector<16x32xf32>
    %21 = arith.truncf %20 : vector<16x32xf32> to vector<16x32xbf16>
    %c0_12 = arith.constant 0 : index
    %c0_13 = arith.constant 0 : index
    %22 = vector.load %arg4[%c0_12, %c0_13] : memref<32x128xbf16, #tpu.memory_space<vmem>>, vector<32x128xbf16>
    %cst_14 = arith.constant dense<0.000000e+00> : vector<16x128xf32>
    %23 = tpu.matmul %21, %22, %cst_14 {dimension_numbers = #tpu.dot_dimension_numbers<[1], [0], [0], [1], [0, 0, 1, 1], [], []>} : vector<16x32xbf16>, vector<32x128xbf16>, vector<16x128xf32> -> vector<16x128xf32>
    %24 = vector.extract_strided_slice %23 {offsets = [0, 0], sizes = [16, 64], strides = [1, 1]} : vector<16x128xf32> to vector<16x64xf32>
    %25 = vector.extract_strided_slice %23 {offsets = [0, 64], sizes = [16, 64], strides = [1, 1]} : vector<16x128xf32> to vector<16x64xf32>
    %c3 = arith.constant 3 : index
    %c0_15 = arith.constant 0 : index
    %26 = vector.load %arg5[%c3, %c0_15] : memref<4x64xf32, #tpu.memory_space<vmem>>, vector<1x64xf32>
    %27 = vector.broadcast %26 : vector<1x64xf32> to vector<16x64xf32>
    %28 = arith.mulf %24, %27 : vector<16x64xf32>
    %cst_16 = arith.constant 0.000000e+00 : f32
    %29 = vector.broadcast %cst_16 : f32 to vector<1x64xf32>
    %30 = vector.extract_strided_slice %24 {offsets = [0, 0], sizes = [15, 64], strides = [1, 1]} : vector<16x64xf32> to vector<15x64xf32>
    %31 = tpu.concatenate %29, %30 in 0 : vector<1x64xf32>, vector<15x64xf32> -> vector<16x64xf32>
    %c2 = arith.constant 2 : index
    %c0_17 = arith.constant 0 : index
    %32 = vector.load %arg5[%c2, %c0_17] : memref<4x64xf32, #tpu.memory_space<vmem>>, vector<1x64xf32>
    %33 = vector.broadcast %32 : vector<1x64xf32> to vector<16x64xf32>
    %34 = arith.mulf %31, %33 : vector<16x64xf32>
    %35 = arith.addf %28, %34 : vector<16x64xf32>
    %cst_18 = arith.constant 0.000000e+00 : f32
    %36 = vector.broadcast %cst_18 : f32 to vector<2x64xf32>
    %37 = vector.extract_strided_slice %24 {offsets = [0, 0], sizes = [14, 64], strides = [1, 1]} : vector<16x64xf32> to vector<14x64xf32>
    %38 = tpu.concatenate %36, %37 in 0 : vector<2x64xf32>, vector<14x64xf32> -> vector<16x64xf32>
    %c1 = arith.constant 1 : index
    %c0_19 = arith.constant 0 : index
    %39 = vector.load %arg5[%c1, %c0_19] : memref<4x64xf32, #tpu.memory_space<vmem>>, vector<1x64xf32>
    %40 = vector.broadcast %39 : vector<1x64xf32> to vector<16x64xf32>
    %41 = arith.mulf %38, %40 : vector<16x64xf32>
    %42 = arith.addf %35, %41 : vector<16x64xf32>
    %cst_20 = arith.constant 0.000000e+00 : f32
    %43 = vector.broadcast %cst_20 : f32 to vector<3x64xf32>
    %44 = vector.extract_strided_slice %24 {offsets = [0, 0], sizes = [13, 64], strides = [1, 1]} : vector<16x64xf32> to vector<13x64xf32>
    %45 = tpu.concatenate %43, %44 in 0 : vector<3x64xf32>, vector<13x64xf32> -> vector<16x64xf32>
    %c0_21 = arith.constant 0 : index
    %c0_22 = arith.constant 0 : index
    %46 = vector.load %arg5[%c0_21, %c0_22] : memref<4x64xf32, #tpu.memory_space<vmem>>, vector<1x64xf32>
    %47 = vector.broadcast %46 : vector<1x64xf32> to vector<16x64xf32>
    %48 = arith.mulf %45, %47 : vector<16x64xf32>
    %49 = arith.addf %42, %48 : vector<16x64xf32>
    %c0_23 = arith.constant 0 : index
    %c0_24 = arith.constant 0 : index
    %50 = vector.load %arg6[%c0_23, %c0_24] : memref<1x64xf32, #tpu.memory_space<vmem>>, vector<1x64xf32>
    %51 = vector.broadcast %50 : vector<1x64xf32> to vector<16x64xf32>
    %52 = arith.addf %49, %51 : vector<16x64xf32>
    %cst_25 = arith.constant 0.000000e+00 : f32
    %53 = vector.broadcast %cst_25 : f32 to vector<16x64xf32>
    %54 = arith.subf %53, %52 : vector<16x64xf32>
    %55 = math.exp %54 : vector<16x64xf32>
    %cst_26 = arith.constant 1.000000e+00 : f32
    %56 = vector.broadcast %cst_26 : f32 to vector<16x64xf32>
    %57 = arith.addf %56, %55 : vector<16x64xf32>
    %cst_27 = arith.constant 1.000000e+00 : f32
    %58 = vector.broadcast %cst_27 : f32 to vector<16x64xf32>
    %59 = arith.divf %58, %57 : vector<16x64xf32>
    %60 = arith.mulf %52, %59 : vector<16x64xf32>
    %61 = arith.truncf %60 : vector<16x64xf32> to vector<16x64xbf16>
    %c0_28 = arith.constant 0 : index
    %c0_29 = arith.constant 0 : index
    %62 = vector.load %arg7[%c0_28, %c0_29] : memref<64x34xbf16, #tpu.memory_space<vmem>>, vector<64x34xbf16>
    %cst_30 = arith.constant dense<0.000000e+00> : vector<16x34xf32>
    %63 = tpu.matmul %61, %62, %cst_30 {dimension_numbers = #tpu.dot_dimension_numbers<[1], [0], [0], [1], [0, 0, 1, 1], [], []>} : vector<16x64xbf16>, vector<64x34xbf16>, vector<16x34xf32> -> vector<16x34xf32>
    %64 = vector.extract_strided_slice %63 {offsets = [0, 0], sizes = [16, 2], strides = [1, 1]} : vector<16x34xf32> to vector<16x2xf32>
    %65 = vector.extract_strided_slice %63 {offsets = [0, 2], sizes = [16, 16], strides = [1, 1]} : vector<16x34xf32> to vector<16x16xf32>
    %66 = vector.extract_strided_slice %63 {offsets = [0, 18], sizes = [16, 16], strides = [1, 1]} : vector<16x34xf32> to vector<16x16xf32>
    %67 = arith.truncf %64 : vector<16x2xf32> to vector<16x2xbf16>
    %c0_31 = arith.constant 0 : index
    %c0_32 = arith.constant 0 : index
    %68 = vector.load %arg8[%c0_31, %c0_32] : memref<2x64xbf16, #tpu.memory_space<vmem>>, vector<2x64xbf16>
    %cst_33 = arith.constant dense<0.000000e+00> : vector<16x64xf32>
    %69 = tpu.matmul %67, %68, %cst_33 {dimension_numbers = #tpu.dot_dimension_numbers<[1], [0], [0], [1], [0, 0, 1, 1], [], []>} : vector<16x2xbf16>, vector<2x64xbf16>, vector<16x64xf32> -> vector<16x64xf32>
    %c0_34 = arith.constant 0 : index
    %c0_35 = arith.constant 0 : index
    %70 = vector.load %arg9[%c0_34, %c0_35] : memref<1x64xf32, #tpu.memory_space<vmem>>, vector<1x64xf32>
    %71 = vector.broadcast %70 : vector<1x64xf32> to vector<16x64xf32>
    %72 = arith.addf %69, %71 : vector<16x64xf32>
    %cst_36 = arith.constant 2.000000e+01 : f32
    %73 = vector.broadcast %cst_36 : f32 to vector<16x64xf32>
    %74 = arith.cmpf ogt, %72, %73 : vector<16x64xf32>
    %75 = math.exp %72 : vector<16x64xf32>
    %cst_37 = arith.constant 1.000000e+00 : f32
    %76 = vector.broadcast %cst_37 : f32 to vector<16x64xf32>
    %77 = arith.addf %76, %75 : vector<16x64xf32>
    %78 = math.log %77 : vector<16x64xf32>
    %79 = arith.select %74, %72, %78 : vector<16x64xi1>, vector<16x64xf32>
    %c0_38 = arith.constant 0 : index
    %c0_39 = arith.constant 0 : index
    %80 = vector.load %arg15[%c0_38, %c0_39] : memref<16x64xf32, #tpu.memory_space<vmem>>, vector<16x64xf32>
    tpu.vector_store %arg15[%c0_38, %c0_39], %79 {strides = array<i32>} : memref<16x64xf32, #tpu.memory_space<vmem>>, vector<16x64xf32>,
    %81 = arith.mulf %79, %60 : vector<16x64xf32>
    %c0_40 = arith.constant 0 : index
    %c0_41 = arith.constant 0 : index
    %82 = vector.load %arg16[%c0_40, %c0_41] : memref<16x64xf32, #tpu.memory_space<vmem>>, vector<16x64xf32>
    tpu.vector_store %arg16[%c0_40, %c0_41], %81 {strides = array<i32>} : memref<16x64xf32, #tpu.memory_space<vmem>>, vector<16x64xf32>,
    %c0_42 = arith.constant 0 : index
    %c0_43 = arith.constant 0 : index
    %83 = vector.load %arg17[%c0_42, %c0_43] : memref<16x16xf32, #tpu.memory_space<vmem>>, vector<16x16xf32>
    tpu.vector_store %arg17[%c0_42, %c0_43], %65 {strides = array<i32>} : memref<16x16xf32, #tpu.memory_space<vmem>>, vector<16x16xf32>,
    %c0_44 = arith.constant 0 : index
    %c0_45 = arith.constant 0 : index
    %84 = vector.load %arg18[%c0_44, %c0_45] : memref<16x16xf32, #tpu.memory_space<vmem>>, vector<16x16xf32>
    tpu.vector_store %arg18[%c0_44, %c0_45], %66 {strides = array<i32>} : memref<16x16xf32, #tpu.memory_space<vmem>>, vector<16x16xf32>,
    %c0_46 = arith.constant 0 : index
    %c0_47 = arith.constant 0 : index
    %85 = vector.load %arg10[%c0_46, %c0_47] : memref<16x64xf32, #tpu.memory_space<vmem>>, vector<16x64xf32>
    %86 = math.exp %85 : vector<16x64xf32>
    %cst_48 = arith.constant 0.000000e+00 : f32
    %87 = vector.broadcast %cst_48 : f32 to vector<16x64xf32>
    %88 = arith.subf %87, %86 : vector<16x64xf32>
    %cst_49 = arith.constant 0.000000e+00 : f32
    %89 = vector.broadcast %cst_49 : f32 to vector<16x64xf32>
    %c0_50 = arith.constant 0 : index
    %c0_51 = arith.constant 0 : index
    %90 = vector.load %arg20[%c0_50, %c0_51] : memref<16x64xf32, #tpu.memory_space<vmem>>, vector<16x64xf32>
    tpu.vector_store %arg20[%c0_50, %c0_51], %89 {strides = array<i32>} : memref<16x64xf32, #tpu.memory_space<vmem>>, vector<16x64xf32>,
    %c0_i32 = arith.constant 0 : i32
    %c2_i32 = arith.constant 2 : i32
    %91 = arith.addi %c0_i32, %c2_i32 : i32
    %c1_i32 = arith.constant 1 : i32
    scf.for %arg21 = %c0_i32 to %91 step %c1_i32  : i32 {
      %c1_i32_66 = arith.constant 1 : i32
      %112 = arith.muli %arg21, %c1_i32_66 : i32
      %c0_i32_67 = arith.constant 0 : i32
      %113 = arith.addi %c0_i32_67, %112 : i32
      %c8_i32 = arith.constant 8 : i32
      %114 = arith.muli %113, %c8_i32 : i32
      %115 = tpu.assume_multiple %114, 8 : i32
      %116 = arith.index_cast %115 : i32 to index
      %c0_68 = arith.constant 0 : index
      %117 = vector.load %arg15[%116, %c0_68] : memref<16x64xf32, #tpu.memory_space<vmem>>, vector<8x64xf32>
      %118 = arith.index_cast %115 : i32 to index
      %c0_69 = arith.constant 0 : index
      %119 = vector.load %arg16[%118, %c0_69] : memref<16x64xf32, #tpu.memory_space<vmem>>, vector<8x64xf32>
      %120 = arith.index_cast %115 : i32 to index
      %c0_70 = arith.constant 0 : index
      %121 = vector.load %arg17[%120, %c0_70] : memref<16x16xf32, #tpu.memory_space<vmem>>, vector<8x16xf32>
      %122 = arith.index_cast %115 : i32 to index
      %c0_71 = arith.constant 0 : index
      %123 = vector.load %arg18[%122, %c0_71] : memref<16x16xf32, #tpu.memory_space<vmem>>, vector<8x16xf32>
      %124 = vector.shape_cast %117 : vector<8x64xf32> to vector<8x1x64xf32>
      %125 = vector.shape_cast %88 : vector<16x64xf32> to vector<1x16x64xf32>
      %126 = vector.broadcast %124 : vector<8x1x64xf32> to vector<8x16x64xf32>
      %127 = vector.broadcast %125 : vector<1x16x64xf32> to vector<8x16x64xf32>
      %128 = arith.mulf %126, %127 : vector<8x16x64xf32>
      %129 = math.exp %128 : vector<8x16x64xf32>
      %130 = vector.shape_cast %121 : vector<8x16xf32> to vector<8x16x1xf32>
      %131 = vector.shape_cast %119 : vector<8x64xf32> to vector<8x1x64xf32>
      %132 = vector.broadcast %130 : vector<8x16x1xf32> to vector<8x16x64xf32>
      %133 = vector.broadcast %131 : vector<8x1x64xf32> to vector<8x16x64xf32>
      %134 = arith.mulf %132, %133 : vector<8x16x64xf32>
      %135 = vector.shape_cast %123 : vector<8x16xf32> to vector<8x16x1xf32>
      %c0_72 = arith.constant 0 : index
      %c0_73 = arith.constant 0 : index
      %136 = vector.load %arg20[%c0_72, %c0_73] : memref<16x64xf32, #tpu.memory_space<vmem>>, vector<16x64xf32>
      %137 = vector.extract_strided_slice %129 {offsets = [0, 0, 0], sizes = [1, 16, 64], strides = [1, 1, 1]} : vector<8x16x64xf32> to vector<1x16x64xf32>
      %138 = vector.shape_cast %137 : vector<1x16x64xf32> to vector<16x64xf32>
      %139 = arith.mulf %138, %136 : vector<16x64xf32>
      %140 = vector.extract_strided_slice %134 {offsets = [0, 0, 0], sizes = [1, 16, 64], strides = [1, 1, 1]} : vector<8x16x64xf32> to vector<1x16x64xf32>
      %141 = vector.shape_cast %140 : vector<1x16x64xf32> to vector<16x64xf32>
      %142 = arith.addf %139, %141 : vector<16x64xf32>
      %143 = vector.extract_strided_slice %135 {offsets = [0, 0, 0], sizes = [1, 16, 1], strides = [1, 1, 1]} : vector<8x16x1xf32> to vector<1x16x1xf32>
      %144 = vector.shape_cast %143 : vector<1x16x1xf32> to vector<16x1xf32>
      %145 = vector.broadcast %144 : vector<16x1xf32> to vector<16x64xf32>
      %146 = arith.mulf %145, %142 : vector<16x64xf32>
      %cst_74 = arith.constant dense<0.000000e+00> : vector<64xf32>
      %147 = vector.multi_reduction <add>, %146, %cst_74 [0] : vector<16x64xf32> to vector<64xf32>
      %148 = vector.shape_cast %147 : vector<64xf32> to vector<1x64xf32>
      %149 = vector.extract_strided_slice %129 {offsets = [1, 0, 0], sizes = [1, 16, 64], strides = [1, 1, 1]} : vector<8x16x64xf32> to vector<1x16x64xf32>
      %150 = vector.shape_cast %149 : vector<1x16x64xf32> to vector<16x64xf32>
      %151 = arith.mulf %150, %142 : vector<16x64xf32>
      %152 = vector.extract_strided_slice %134 {offsets = [1, 0, 0], sizes = [1, 16, 64], strides = [1, 1, 1]} : vector<8x16x64xf32> to vector<1x16x64xf32>
      %153 = vector.shape_cast %152 : vector<1x16x64xf32> to vector<16x64xf32>
      %154 = arith.addf %151, %153 : vector<16x64xf32>
      %155 = vector.extract_strided_slice %135 {offsets = [1, 0, 0], sizes = [1, 16, 1], strides = [1, 1, 1]} : vector<8x16x1xf32> to vector<1x16x1xf32>
      %156 = vector.shape_cast %155 : vector<1x16x1xf32> to vector<16x1xf32>
      %157 = vector.broadcast %156 : vector<16x1xf32> to vector<16x64xf32>
      %158 = arith.mulf %157, %154 : vector<16x64xf32>
      %cst_75 = arith.constant dense<0.000000e+00> : vector<64xf32>
      %159 = vector.multi_reduction <add>, %158, %cst_75 [0] : vector<16x64xf32> to vector<64xf32>
      %160 = vector.shape_cast %159 : vector<64xf32> to vector<1x64xf32>
      %161 = vector.extract_strided_slice %129 {offsets = [2, 0, 0], sizes = [1, 16, 64], strides = [1, 1, 1]} : vector<8x16x64xf32> to vector<1x16x64xf32>
      %162 = vector.shape_cast %161 : vector<1x16x64xf32> to vector<16x64xf32>
      %163 = arith.mulf %162, %154 : vector<16x64xf32>
      %164 = vector.extract_strided_slice %134 {offsets = [2, 0, 0], sizes = [1, 16, 64], strides = [1, 1, 1]} : vector<8x16x64xf32> to vector<1x16x64xf32>
      %165 = vector.shape_cast %164 : vector<1x16x64xf32> to vector<16x64xf32>
      %166 = arith.addf %163, %165 : vector<16x64xf32>
      %167 = vector.extract_strided_slice %135 {offsets = [2, 0, 0], sizes = [1, 16, 1], strides = [1, 1, 1]} : vector<8x16x1xf32> to vector<1x16x1xf32>
      %168 = vector.shape_cast %167 : vector<1x16x1xf32> to vector<16x1xf32>
      %169 = vector.broadcast %168 : vector<16x1xf32> to vector<16x64xf32>
      %170 = arith.mulf %169, %166 : vector<16x64xf32>
      %cst_76 = arith.constant dense<0.000000e+00> : vector<64xf32>
      %171 = vector.multi_reduction <add>, %170, %cst_76 [0] : vector<16x64xf32> to vector<64xf32>
      %172 = vector.shape_cast %171 : vector<64xf32> to vector<1x64xf32>
      %173 = vector.extract_strided_slice %129 {offsets = [3, 0, 0], sizes = [1, 16, 64], strides = [1, 1, 1]} : vector<8x16x64xf32> to vector<1x16x64xf32>
      %174 = vector.shape_cast %173 : vector<1x16x64xf32> to vector<16x64xf32>
      %175 = arith.mulf %174, %166 : vector<16x64xf32>
      %176 = vector.extract_strided_slice %134 {offsets = [3, 0, 0], sizes = [1, 16, 64], strides = [1, 1, 1]} : vector<8x16x64xf32> to vector<1x16x64xf32>
      %177 = vector.shape_cast %176 : vector<1x16x64xf32> to vector<16x64xf32>
      %178 = arith.addf %175, %177 : vector<16x64xf32>
      %179 = vector.extract_strided_slice %135 {offsets = [3, 0, 0], sizes = [1, 16, 1], strides = [1, 1, 1]} : vector<8x16x1xf32> to vector<1x16x1xf32>
      %180 = vector.shape_cast %179 : vector<1x16x1xf32> to vector<16x1xf32>
      %181 = vector.broadcast %180 : vector<16x1xf32> to vector<16x64xf32>
      %182 = arith.mulf %181, %178 : vector<16x64xf32>
      %cst_77 = arith.constant dense<0.000000e+00> : vector<64xf32>
      %183 = vector.multi_reduction <add>, %182, %cst_77 [0] : vector<16x64xf32> to vector<64xf32>
      %184 = vector.shape_cast %183 : vector<64xf32> to vector<1x64xf32>
      %185 = vector.extract_strided_slice %129 {offsets = [4, 0, 0], sizes = [1, 16, 64], strides = [1, 1, 1]} : vector<8x16x64xf32> to vector<1x16x64xf32>
      %186 = vector.shape_cast %185 : vector<1x16x64xf32> to vector<16x64xf32>
      %187 = arith.mulf %186, %178 : vector<16x64xf32>
      %188 = vector.extract_strided_slice %134 {offsets = [4, 0, 0], sizes = [1, 16, 64], strides = [1, 1, 1]} : vector<8x16x64xf32> to vector<1x16x64xf32>
      %189 = vector.shape_cast %188 : vector<1x16x64xf32> to vector<16x64xf32>
      %190 = arith.addf %187, %189 : vector<16x64xf32>
      %191 = vector.extract_strided_slice %135 {offsets = [4, 0, 0], sizes = [1, 16, 1], strides = [1, 1, 1]} : vector<8x16x1xf32> to vector<1x16x1xf32>
      %192 = vector.shape_cast %191 : vector<1x16x1xf32> to vector<16x1xf32>
      %193 = vector.broadcast %192 : vector<16x1xf32> to vector<16x64xf32>
      %194 = arith.mulf %193, %190 : vector<16x64xf32>
      %cst_78 = arith.constant dense<0.000000e+00> : vector<64xf32>
      %195 = vector.multi_reduction <add>, %194, %cst_78 [0] : vector<16x64xf32> to vector<64xf32>
      %196 = vector.shape_cast %195 : vector<64xf32> to vector<1x64xf32>
      %197 = vector.extract_strided_slice %129 {offsets = [5, 0, 0], sizes = [1, 16, 64], strides = [1, 1, 1]} : vector<8x16x64xf32> to vector<1x16x64xf32>
      %198 = vector.shape_cast %197 : vector<1x16x64xf32> to vector<16x64xf32>
      %199 = arith.mulf %198, %190 : vector<16x64xf32>
      %200 = vector.extract_strided_slice %134 {offsets = [5, 0, 0], sizes = [1, 16, 64], strides = [1, 1, 1]} : vector<8x16x64xf32> to vector<1x16x64xf32>
      %201 = vector.shape_cast %200 : vector<1x16x64xf32> to vector<16x64xf32>
      %202 = arith.addf %199, %201 : vector<16x64xf32>
      %203 = vector.extract_strided_slice %135 {offsets = [5, 0, 0], sizes = [1, 16, 1], strides = [1, 1, 1]} : vector<8x16x1xf32> to vector<1x16x1xf32>
      %204 = vector.shape_cast %203 : vector<1x16x1xf32> to vector<16x1xf32>
      %205 = vector.broadcast %204 : vector<16x1xf32> to vector<16x64xf32>
      %206 = arith.mulf %205, %202 : vector<16x64xf32>
      %cst_79 = arith.constant dense<0.000000e+00> : vector<64xf32>
      %207 = vector.multi_reduction <add>, %206, %cst_79 [0] : vector<16x64xf32> to vector<64xf32>
      %208 = vector.shape_cast %207 : vector<64xf32> to vector<1x64xf32>
      %209 = vector.extract_strided_slice %129 {offsets = [6, 0, 0], sizes = [1, 16, 64], strides = [1, 1, 1]} : vector<8x16x64xf32> to vector<1x16x64xf32>
      %210 = vector.shape_cast %209 : vector<1x16x64xf32> to vector<16x64xf32>
      %211 = arith.mulf %210, %202 : vector<16x64xf32>
      %212 = vector.extract_strided_slice %134 {offsets = [6, 0, 0], sizes = [1, 16, 64], strides = [1, 1, 1]} : vector<8x16x64xf32> to vector<1x16x64xf32>
      %213 = vector.shape_cast %212 : vector<1x16x64xf32> to vector<16x64xf32>
      %214 = arith.addf %211, %213 : vector<16x64xf32>
      %215 = vector.extract_strided_slice %135 {offsets = [6, 0, 0], sizes = [1, 16, 1], strides = [1, 1, 1]} : vector<8x16x1xf32> to vector<1x16x1xf32>
      %216 = vector.shape_cast %215 : vector<1x16x1xf32> to vector<16x1xf32>
      %217 = vector.broadcast %216 : vector<16x1xf32> to vector<16x64xf32>
      %218 = arith.mulf %217, %214 : vector<16x64xf32>
      %cst_80 = arith.constant dense<0.000000e+00> : vector<64xf32>
      %219 = vector.multi_reduction <add>, %218, %cst_80 [0] : vector<16x64xf32> to vector<64xf32>
      %220 = vector.shape_cast %219 : vector<64xf32> to vector<1x64xf32>
      %221 = vector.extract_strided_slice %129 {offsets = [7, 0, 0], sizes = [1, 16, 64], strides = [1, 1, 1]} : vector<8x16x64xf32> to vector<1x16x64xf32>
      %222 = vector.shape_cast %221 : vector<1x16x64xf32> to vector<16x64xf32>
      %223 = arith.mulf %222, %214 : vector<16x64xf32>
      %224 = vector.extract_strided_slice %134 {offsets = [7, 0, 0], sizes = [1, 16, 64], strides = [1, 1, 1]} : vector<8x16x64xf32> to vector<1x16x64xf32>
      %225 = vector.shape_cast %224 : vector<1x16x64xf32> to vector<16x64xf32>
      %226 = arith.addf %223, %225 : vector<16x64xf32>
      %227 = vector.extract_strided_slice %135 {offsets = [7, 0, 0], sizes = [1, 16, 1], strides = [1, 1, 1]} : vector<8x16x1xf32> to vector<1x16x1xf32>
      %228 = vector.shape_cast %227 : vector<1x16x1xf32> to vector<16x1xf32>
      %229 = vector.broadcast %228 : vector<16x1xf32> to vector<16x64xf32>
      %230 = arith.mulf %229, %226 : vector<16x64xf32>
      %cst_81 = arith.constant dense<0.000000e+00> : vector<64xf32>
      %231 = vector.multi_reduction <add>, %230, %cst_81 [0] : vector<16x64xf32> to vector<64xf32>
      %232 = vector.shape_cast %231 : vector<64xf32> to vector<1x64xf32>
      %c0_82 = arith.constant 0 : index
      %c0_83 = arith.constant 0 : index
      %233 = vector.load %arg20[%c0_82, %c0_83] : memref<16x64xf32, #tpu.memory_space<vmem>>, vector<16x64xf32>
      tpu.vector_store %arg20[%c0_82, %c0_83], %226 {strides = array<i32>} : memref<16x64xf32, #tpu.memory_space<vmem>>, vector<16x64xf32>,
      %234 = tpu.concatenate %148, %160, %172, %184, %196, %208, %220, %232 in 0 : vector<1x64xf32>, vector<1x64xf32>, vector<1x64xf32>, vector<1x64xf32>, vector<1x64xf32>, vector<1x64xf32>, vector<1x64xf32>, vector<1x64xf32> -> vector<8x64xf32>
      %235 = arith.index_cast %115 : i32 to index
      %c0_84 = arith.constant 0 : index
      %236 = vector.load %arg19[%235, %c0_84] : memref<16x64xf32, #tpu.memory_space<vmem>>, vector<8x64xf32>
      tpu.vector_store %arg19[%235, %c0_84], %234 {strides = array<i32>} : memref<16x64xf32, #tpu.memory_space<vmem>>, vector<8x64xf32>,
    }
    %c2_i32_52 = arith.constant 2 : i32
    %c0_53 = arith.constant 0 : index
    %c0_54 = arith.constant 0 : index
    %92 = vector.load %arg19[%c0_53, %c0_54] : memref<16x64xf32, #tpu.memory_space<vmem>>, vector<16x64xf32>
    %c0_55 = arith.constant 0 : index
    %c0_56 = arith.constant 0 : index
    %93 = vector.load %arg11[%c0_55, %c0_56] : memref<1x64xf32, #tpu.memory_space<vmem>>, vector<1x64xf32>
    %94 = vector.broadcast %93 : vector<1x64xf32> to vector<16x64xf32>
    %95 = arith.mulf %94, %60 : vector<16x64xf32>
    %96 = arith.addf %92, %95 : vector<16x64xf32>
    %cst_57 = arith.constant 0.000000e+00 : f32
    %97 = vector.broadcast %cst_57 : f32 to vector<16x64xf32>
    %98 = arith.subf %97, %25 : vector<16x64xf32>
    %99 = math.exp %98 : vector<16x64xf32>
    %cst_58 = arith.constant 1.000000e+00 : f32
    %100 = vector.broadcast %cst_58 : f32 to vector<16x64xf32>
    %101 = arith.addf %100, %99 : vector<16x64xf32>
    %cst_59 = arith.constant 1.000000e+00 : f32
    %102 = vector.broadcast %cst_59 : f32 to vector<16x64xf32>
    %103 = arith.divf %102, %101 : vector<16x64xf32>
    %104 = arith.mulf %25, %103 : vector<16x64xf32>
    %105 = arith.mulf %96, %104 : vector<16x64xf32>
    %106 = arith.truncf %105 : vector<16x64xf32> to vector<16x64xbf16>
    %c0_60 = arith.constant 0 : index
    %c0_61 = arith.constant 0 : index
    %107 = vector.load %arg12[%c0_60, %c0_61] : memref<64x32xbf16, #tpu.memory_space<vmem>>, vector<64x32xbf16>
    %cst_62 = arith.constant dense<0.000000e+00> : vector<16x32xf32>
    %108 = tpu.matmul %106, %107, %cst_62 {dimension_numbers = #tpu.dot_dimension_numbers<[1], [0], [0], [1], [0, 0, 1, 1], [], []>} : vector<16x64xbf16>, vector<64x32xbf16>, vector<16x32xf32> -> vector<16x32xf32>
    %c0_63 = arith.constant 0 : index
    %c0_64 = arith.constant 0 : index
    %c0_65 = arith.constant 0 : index
    %109 = vector.load %arg13[%c0_63, %c0_64, %c0_65] : memref<1x16x32xf32, #tpu.memory_space<vmem>>, vector<1x16x32xf32>
    %110 = vector.shape_cast %109 : vector<1x16x32xf32> to vector<16x32xf32>
    %111 = vector.shape_cast %108 : vector<16x32xf32> to vector<1x16x32xf32>
    tpu.vector_store %arg13[%c0_63, %c0_64, %c0_65], %111 {strides = array<i32>} : memref<1x16x32xf32, #tpu.memory_space<vmem>>, vector<1x16x32xf32>,
    return
  }
  func.func @transform_0(%arg0: i32) -> (i32, i32, i32) {
    %c0_i32 = arith.constant 0 : i32
    %c0_i32_0 = arith.constant 0 : i32
    %c0_i32_1 = arith.constant 0 : i32
    return %arg0, %c0_i32, %c0_i32_0 : i32, i32, i32
  }
  func.func @transform_1(%arg0: i32) -> (i32, i32, i32) {
    %c0_i32 = arith.constant 0 : i32
    %c0_i32_0 = arith.constant 0 : i32
    %c0_i32_1 = arith.constant 0 : i32
    return %arg0, %c0_i32, %c0_i32_0 : i32, i32, i32
  }
  func.func @transform_2(%arg0: i32) -> (i32, i32) {
    %c0_i32 = arith.constant 0 : i32
    %c0_i32_0 = arith.constant 0 : i32
    %c0_i32_1 = arith.constant 0 : i32
    return %c0_i32, %c0_i32_0 : i32, i32
  }
  func.func @transform_3(%arg0: i32) -> (i32, i32) {
    %c0_i32 = arith.constant 0 : i32
    %c0_i32_0 = arith.constant 0 : i32
    %c0_i32_1 = arith.constant 0 : i32
    return %c0_i32, %c0_i32_0 : i32, i32
  }
  func.func @transform_4(%arg0: i32) -> (i32, i32) {
    %c0_i32 = arith.constant 0 : i32
    %c0_i32_0 = arith.constant 0 : i32
    %c0_i32_1 = arith.constant 0 : i32
    return %c0_i32, %c0_i32_0 : i32, i32
  }
  func.func @transform_5(%arg0: i32) -> (i32, i32) {
    %c0_i32 = arith.constant 0 : i32
    %c0_i32_0 = arith.constant 0 : i32
    %c0_i32_1 = arith.constant 0 : i32
    return %c0_i32, %c0_i32_0 : i32, i32
  }
  func.func @transform_6(%arg0: i32) -> (i32, i32) {
    %c0_i32 = arith.constant 0 : i32
    %c0_i32_0 = arith.constant 0 : i32
    %c0_i32_1 = arith.constant 0 : i32
    return %c0_i32, %c0_i32_0 : i32, i32
  }
  func.func @transform_7(%arg0: i32) -> (i32, i32) {
    %c0_i32 = arith.constant 0 : i32
    %c0_i32_0 = arith.constant 0 : i32
    %c0_i32_1 = arith.constant 0 : i32
    return %c0_i32, %c0_i32_0 : i32, i32
  }
  func.func @transform_8(%arg0: i32) -> (i32, i32) {
    %c0_i32 = arith.constant 0 : i32
    %c0_i32_0 = arith.constant 0 : i32
    %c0_i32_1 = arith.constant 0 : i32
    return %c0_i32, %c0_i32_0 : i32, i32
  }
  func.func @transform_9(%arg0: i32) -> (i32, i32) {
    %c0_i32 = arith.constant 0 : i32
    %c0_i32_0 = arith.constant 0 : i32
    %c0_i32_1 = arith.constant 0 : i32
    return %c0_i32, %c0_i32_0 : i32, i32
  }
  func.func @transform_10(%arg0: i32) -> (i32, i32) {
    %c0_i32 = arith.constant 0 : i32
    %c0_i32_0 = arith.constant 0 : i32
    %c0_i32_1 = arith.constant 0 : i32
    return %c0_i32, %c0_i32_0 : i32, i32
  }
  func.func @transform_11(%arg0: i32) -> (i32, i32) {
    %c0_i32 = arith.constant 0 : i32
    %c0_i32_0 = arith.constant 0 : i32
    %c0_i32_1 = arith.constant 0 : i32
    return %c0_i32, %c0_i32_0 : i32, i32
  }
  func.func @transform_12(%arg0: i32) -> (i32, i32, i32) {
    %c0_i32 = arith.constant 0 : i32
    %c0_i32_0 = arith.constant 0 : i32
    %c0_i32_1 = arith.constant 0 : i32
    return %arg0, %c0_i32, %c0_i32_0 : i32, i32, i32
  }
  func.func @transform_13(%arg0: i32) -> (i32, i32, i32) {
    %c0_i32 = arith.constant 0 : i32
    %c0_i32_0 = arith.constant 0 : i32
    %c0_i32_1 = arith.constant 0 : i32
    return %arg0, %c0_i32, %c0_i32_0 : i32, i32, i32
  }
}

</mosaic_0001>

<llo_original>
// kernel: mamba_lm_forward.6
$region0: #{mamba_lm_forward.6}
  #allocation0 [shape = 'u32[]', space=smem, size = 0x4, offset = 0x4, fixed_abs, tag = 'smem constant byte address 0x4 - core index']
  #allocation1 [shape = 'u32[144,128]{1,0:T(1,128)}', space=vmem, size = 0x12000, scoped, tag = 'internal scratch']
  %s0 = inlined_call_operand.vmem [shape: f32[2,16,32], index: 0, kind: input, shape index: {}]
  %s1 = inlined_call_operand.vmem [shape: f32[2,16,32], index: 1, kind: input, shape index: {}]
  %s2 = inlined_call_operand.vmem [shape: f32[1,32], index: 2, kind: input, shape index: {}]
  %s3 = inlined_call_operand.vmem [shape: bf16[2,16,32], index: 3, kind: output, shape index: {}]
  %s4 = sld [smem:[#allocation0]]
  $region45: #{mamba_lm_forward.6} parent=0
    _
  %s6 = ssub.s32 1, %s4
  %s7 = scalar_select 0, %s6, %s4
  loop: start=0, step=1, limit=4
  $region2: #{mamba_lm_forward.6} parent=0 // loop_pre_header
    _
  $region3: #{mamba_lm_forward.6} parent=0 // loop_header
    %s9 = sphi 0, %s13
    %p10 = scmp.ge.s32.totalorder %s9, 4
    %s19 = sphi 0, %s21
    %s22 = sphi 0, %s19
    %s23 = sphi 0, %s22
    %s39 = sphi 0, %s23
    %s45 = sphi 0, %s47
    %s48 = sphi 0, %s45
    %s49 = sphi 0, %s48
    %s65 = sphi 0, %s49
    %s69 = sphi 0, %s69
    %s71 = sphi 0, %s69
    %s72 = sphi 0, %s71
    %s86 = sphi 0, %s72
    %s92 = sphi 0, %s94
    %s95 = sphi 0, %s92
    %s96 = sphi 0, %s95
    %s112 = sphi 0, %s96
  $region4: #{mamba_lm_forward.6} parent=0 // loop_header_branch
    %12 = sbr.rel (%p10) target = $region8
  $region5: #{mamba_lm_forward.6} parent=0 // loop_body
    %s14 = ssub.s32 %s9, 1
    %s15 = ssub.s32 %s9, 2
    %s16 = sadd.s32 %s9, 1
    %s17 = ssub.s32 %s9, %s16
    %p18 = scmp.eq.s32.totalorder %s17, 0
    %s20 = sadd.s32 %s19, 1
    %s21 = scalar_select %p18, %s19, %s20
    %p24 = pneg %p18
    %p25 = scmp.eq.s32.totalorder %s9, 1
    %p26 = por %p24, %p25
    %p27 = scmp.ne.s32.totalorder %s19, %s22
    %p28 = scmp.eq.s32.totalorder %s9, 0
    %p29 = por %p27, %p28
    %p30 = scmp.ne.s32.totalorder %s19, %s22
    %p31 = scmp.eq.s32.totalorder %s14, 1
    %p32 = por %p30, %p31
    %p33 = scmp.ne.s32.totalorder %s22, %s23
    %p34 = scmp.eq.s32.totalorder %s14, 0
    %p35 = por %p33, %p34
    %p36 = scmp.ne.s32.totalorder %s22, %s23
    %p37 = scmp.eq.s32.totalorder %s15, 1
    %p38 = por %p36, %p37
    %p40 = scmp.ne.s32.totalorder %s23, %s39
    %p41 = scmp.eq.s32.totalorder %s15, 0
    %p42 = por %p40, %p41
    %s43 = ssub.s32 %s9, %s16
    %p44 = scmp.eq.s32.totalorder %s43, 0
    %s46 = sadd.s32 %s45, 1
    %s47 = scalar_select %p44, %s45, %s46
    %p50 = pneg %p44
    %p51 = scmp.eq.s32.totalorder %s9, 1
    %p52 = por %p50, %p51
    %p53 = scmp.ne.s32.totalorder %s45, %s48
    %p54 = scmp.eq.s32.totalorder %s9, 0
    %p55 = por %p53, %p54
    %p56 = scmp.ne.s32.totalorder %s45, %s48
    %p57 = scmp.eq.s32.totalorder %s14, 1
    %p58 = por %p56, %p57
    %p59 = scmp.ne.s32.totalorder %s48, %s49
    %p60 = scmp.eq.s32.totalorder %s14, 0
    %p61 = por %p59, %p60
    %p62 = scmp.ne.s32.totalorder %s48, %s49
    %p63 = scmp.eq.s32.totalorder %s15, 1
    %p64 = por %p62, %p63
    %p66 = scmp.ne.s32.totalorder %s49, %s65
    %p67 = scmp.eq.s32.totalorder %s15, 0
    %p68 = por %p66, %p67
    %s70 = sadd.s32 %s69, 1
    %p73 = scmp.eq.s32.totalorder %s9, 1
    %p74 = scmp.ne.s32.totalorder %s69, %s71
    %p75 = scmp.eq.s32.totalorder %s9, 0
    %p76 = por %p74, %p75
    %p77 = scmp.ne.s32.totalorder %s69, %s71
    %p78 = scmp.eq.s32.totalorder %s14, 1
    %p79 = por %p77, %p78
    %p80 = scmp.ne.s32.totalorder %s71, %s72
    %p81 = scmp.eq.s32.totalorder %s14, 0
    %p82 = por %p80, %p81
    %p83 = scmp.ne.s32.totalorder %s71, %s72
    %p84 = scmp.eq.s32.totalorder %s15, 1
    %p85 = por %p83, %p84
    %p87 = scmp.ne.s32.totalorder %s72, %s86
    %p88 = scmp.eq.s32.totalorder %s15, 0
    %p89 = por %p87, %p88
    %s90 = ssub.s32 %s9, %s16
    %p91 = scmp.eq.s32.totalorder %s90, 0
    %s93 = sadd.s32 %s92, 1
    %s94 = scalar_select %p91, %s92, %s93
    %p97 = pneg %p91
    %p98 = scmp.eq.s32.totalorder %s9, 1
    %p99 = por %p97, %p98
    %p100 = scmp.ne.s32.totalorder %s92, %s95
    %p101 = scmp.eq.s32.totalorder %s9, 0
    %p102 = por %p100, %p101
    %p103 = scmp.ne.s32.totalorder %s92, %s95
    %p104 = scmp.eq.s32.totalorder %s14, 1
    %p105 = por %p103, %p104
    %p106 = scmp.ne.s32.totalorder %s95, %s96
    %p107 = scmp.eq.s32.totalorder %s14, 0
    %p108 = por %p106, %p107
    %p109 = scmp.ne.s32.totalorder %s95, %s96
    %p110 = scmp.eq.s32.totalorder %s15, 1
    %p111 = por %p109, %p110
    %p113 = scmp.ne.s32.totalorder %s96, %s112
    %p114 = scmp.eq.s32.totalorder %s15, 0
    %p115 = por %p113, %p114
    %p116 = scmp.le.s32.totalorder 1, %s9
    %p117 = scmp.lt.s32.totalorder %s9, 3
    %p118 = pnand %p116, %p117
    %p119 = pneg %p118
    // Predicated region
    $region9: #{mamba_lm_forward.6} parent=5 // pred_check
      _
    $region10: #{mamba_lm_forward.6} parent=5 // pred_check_branch
      %121 = sbr.rel (%p118) target = $region12
    $region11: #{mamba_lm_forward.6} parent=5 // pred_region
      %s122 = ssub.s32 %s9, 1
      // Predicated region
      $region13: #{mamba_lm_forward.6} parent=11 // pred_check
        %p123 = pneg %p82
      $region14: #{mamba_lm_forward.6} parent=11 // pred_check_branch
        %125 = sbr.rel (%p123) target = $region16
      $region15: #{mamba_lm_forward.6} parent=11 // pred_region
        _
      $region16: #{mamba_lm_forward.6} parent=11 // pred_fallthru
        _
    $region12: #{mamba_lm_forward.6} parent=5 // pred_fallthru
      _
    %p126 = scmp.lt.s32.totalorder %s9, 2
    // Predicated region
    $region17: #{mamba_lm_forward.6} parent=5 // pred_check
      %p127 = pneg %p126
    $region18: #{mamba_lm_forward.6} parent=5 // pred_check_branch
      %129 = sbr.rel (%p127) target = $region20
    $region19: #{mamba_lm_forward.6} parent=5 // pred_region
      // Predicated region
      $region21: #{mamba_lm_forward.6} parent=19 // pred_check
        %p130 = pneg %p29
      $region22: #{mamba_lm_forward.6} parent=19 // pred_check_branch
        %132 = sbr.rel (%p130) target = $region24
      $region23: #{mamba_lm_forward.6} parent=19 // pred_region
        %p133 = scmp.lt.s32.totalorder %s9, 1
        %s134 = scalar_select %p133, %s9, 1
        %s135 = smul.addr %s134, 2
        %s136 = smul.addr %s135, 8
        %s137 = scalar_lea.vmem %s0, %s136
      $region24: #{mamba_lm_forward.6} parent=19 // pred_fallthru
        _
      // Predicated region
      $region25: #{mamba_lm_forward.6} parent=19 // pred_check
        %p138 = pneg %p55
      $region26: #{mamba_lm_forward.6} parent=19 // pred_check_branch
        %140 = sbr.rel (%p138) target = $region28
      $region27: #{mamba_lm_forward.6} parent=19 // pred_region
        %p141 = scmp.lt.s32.totalorder %s9, 1
        %s142 = scalar_select %p141, %s9, 1
        %s143 = smul.addr %s142, 2
        %s144 = smul.addr %s143, 8
        %s145 = scalar_lea.vmem %s1, %s144
      $region28: #{mamba_lm_forward.6} parent=19 // pred_fallthru
        _
    $region20: #{mamba_lm_forward.6} parent=5 // pred_fallthru
      _
    %p146 = scmp.le.s32.totalorder 1, %s9
    %p147 = scmp.lt.s32.totalorder %s9, 3
    %p148 = pnand %p146, %p147
    %p149 = pneg %p148
    // Predicated region
    $region29: #{mamba_lm_forward.6} parent=5 // pred_check
      _
    $region30: #{mamba_lm_forward.6} parent=5 // pred_check_branch
      %151 = sbr.rel (%p148) target = $region32
    $region31: #{mamba_lm_forward.6} parent=5 // pred_region
      %s152 = ssub.s32 %s9, 1
      %p153 = scmp.lt.s32.totalorder %s14, 1
      %s154 = scalar_select %p153, %s14, 1
      %s155 = smul.addr %s154, 2
      %s156 = smul.addr %s155, 8
      %s157 = scalar_lea.vmem %s0, %s156
      %p158 = pneg %p35
      %p159 = pneg %p32
      %p160 = scmp.lt.s32.totalorder %s14, 1
      %s161 = scalar_select %p160, %s14, 1
      %s162 = smul.addr %s161, 2
      %s163 = smul.addr %s162, 8
      %s164 = scalar_lea.vmem %s1, %s163
      %p165 = pneg %p61
      %p166 = pneg %p58
      %p167 = pneg %p82
      %p168 = pneg %p79
      %p169 = pneg %p108
      %p170 = pneg %p105
      %p171 = scmp.lt.s32.totalorder %s14, 1
      %s172 = scalar_select %p171, %s14, 1
      %s173 = smul.addr %s172, 2
      %s174 = smul.addr %s173, 4
      %s175 = scalar_lea.vmem %s3, %s174
      %p176 = scmp.lt.s32.totalorder %s14, 1
      %s177 = scalar_select %p176, %s14, 1
      %s178 = smul.addr %s177, 2
      %s179 = smul.addr %s178, 8
      %s180 = scalar_lea.vmem %s0, %s179
      %p181 = scmp.lt.s32.totalorder %s14, 1
      %s182 = scalar_select %p181, %s14, 1
      %s183 = smul.addr %s182, 2
      %s184 = smul.addr %s183, 8
      %s185 = scalar_lea.vmem %s1, %s184
      %p186 = scmp.lt.s32.totalorder %s14, 1
      %s187 = scalar_select %p186, %s14, 1
      %s188 = smul.addr %s187, 2
      %s189 = smul.addr %s188, 4
      %s190 = scalar_lea.vmem %s3, %s189
      %v191 = vld [vmem:[%s180] sm:$0xff]
      %v192 = vld [vmem:[%s180 + $0x8] sm:$0xff]
      %v193 = vld [vmem:[%s185] sm:$0xff]
      %v194 = vld [vmem:[%s185 + $0x8] sm:$0xff]
      %v195 = vadd.f32 %v191, %v193
      %v196 = vadd.f32 %v192, %v194
      %v197 = vmul.f32 %v195, %v195
      %v198 = vmul.f32 %v196, %v196
      %vm199 = vcmask 261120
      %v200 = vsel %vm199, %v197, 0.0
      %201 = vadd.xlane.f32.xlu0 %v200
      %v202 = vpop.xlane.xlu0 %201
      %v203 = vsel %vm199, %v198, 0.0
      %204 = vadd.xlane.f32.xlu0 %v203
      %v205 = vpop.xlane.xlu0 %204
      %v206 = vrcp.pop 32.0
      %v207 = vmul.f32 %v202, %v206
      %v208 = vmul.f32 %v205, %v206
      %v209 = vadd.f32 %v207, 1e-05
      %v210 = vadd.f32 %v208, 1e-05
      %v211 = vrsqrt.pop %v209
      %v212 = vrsqrt.pop %v210
      %v213 = vmul.f32 %v195, %v211
      %v214 = vmul.f32 %v196, %v212
      %v215 = vld [vmem:[%s2] sm:$0x1]
      %v217 = vlaneseq
      %v218 = vshrl.u32 %v217, 7
      %v219 = vsub.s32 0, %v218
      %v220 = vrot.slane %v215, %v219
      %v222 = vmul.f32 %v213, %v220
      %v223 = vmul.f32 %v214, %v220
      %v224 = vpack.c.bf16 %v223, %v222
      %v226 = vunpack.c.l.b16 %v224
      %v227 = vunpack.c.h.b16 %v224
      %v228 = vpack.c.b16 %v226, %v226
      %v229 = vpack.c.b16 %v227, %v227
      %vm232 = vcmask 257024
      %233 = vst.msk [vmem:[%s190] sm:$0xf] %vm232, %v228
      %234 = vst.msk [vmem:[%s190 + $0x4] sm:$0xf] %vm232, %v229
      %p235 = scmp.lt.s32.totalorder %s14, 1
      %s236 = scalar_select %p235, %s14, 1
      %s237 = smul.addr %s236, 2
      %s238 = smul.addr %s237, 4
      %s239 = scalar_lea.vmem %s3, %s238
      // Predicated region
      $region33: #{mamba_lm_forward.6} parent=31 // pred_check
        %p240 = pneg %p105
      $region34: #{mamba_lm_forward.6} parent=31 // pred_check_branch
        %242 = sbr.rel (%p240) target = $region36
      $region35: #{mamba_lm_forward.6} parent=31 // pred_region
        _
      $region36: #{mamba_lm_forward.6} parent=31 // pred_fallthru
        _
    $region32: #{mamba_lm_forward.6} parent=5 // pred_fallthru
      _
    %p243 = scmp.le.s32.totalorder 2, %s9
    // Predicated region
    $region37: #{mamba_lm_forward.6} parent=5 // pred_check
      %p244 = pneg %p243
    $region38: #{mamba_lm_forward.6} parent=5 // pred_check_branch
      %246 = sbr.rel (%p244) target = $region40
    $region39: #{mamba_lm_forward.6} parent=5 // pred_region
      %s247 = ssub.s32 %s9, 2
      // Predicated region
      $region41: #{mamba_lm_forward.6} parent=39 // pred_check
        %p248 = pneg %p111
      $region42: #{mamba_lm_forward.6} parent=39 // pred_check_branch
        %250 = sbr.rel (%p248) target = $region44
      $region43: #{mamba_lm_forward.6} parent=39 // pred_region
        %p251 = scmp.lt.s32.totalorder %s15, 1
        %s252 = scalar_select %p251, %s15, 1
        %s253 = smul.addr %s252, 2
        %s254 = smul.addr %s253, 4
        %s255 = scalar_lea.vmem %s3, %s254
      $region44: #{mamba_lm_forward.6} parent=39 // pred_fallthru
        _
    $region40: #{mamba_lm_forward.6} parent=5 // pred_fallthru
      _
  $region6: #{mamba_lm_forward.6} parent=0 // loop_footer
    %s13 = sadd.s32 1, %s9
  $region7: #{mamba_lm_forward.6} parent=0 // loop_footer_branch
    %8 = sbr.rel target = $region3
  $region8: #{mamba_lm_forward.6} parent=0 // loop_exit
    _

// kernel: mamba_lm_forward.7
$region0: #{mamba_lm_forward.7}
  #allocation0 [shape = 'u32[]', space=smem, size = 0x4, offset = 0x4, fixed_abs, tag = 'smem constant byte address 0x4 - core index']
  #allocation1 [shape = 'u32[144,128]{1,0:T(1,128)}', space=vmem, size = 0x12000, scoped, tag = 'internal scratch']
  #allocation2 [shape = 'f32[32,48]{1,0:T(8,128)}', space=vmem, size = 0x4000, scoped, tag = 'scratch operand']
  %s0 = inlined_call_operand.vmem [shape: bf16[32,32], index: 0, kind: input, shape index: {}]
  %s1 = inlined_call_operand.vmem [shape: bf16[32,48], index: 1, kind: input, shape index: {}]
  %s2 = inlined_call_operand.hbm [shape: f32[32,48], index: 2, kind: output, shape index: {}]
  %s3 = sld [smem:[#allocation0]]
  $region26: #{mamba_lm_forward.7} parent=0
    _
  %s5 = ssub.s32 1, %s3
  %s6 = scalar_select 0, %s5, %s3
  $region1: #{mamba_lm_forward.7} parent=0
    #allocation3 [shape = 'u8[16384]{0}', space=vmem, size = 0x4000, scoped, tag = 'output window, operand 0, single buffered']
    #allocation4 [shape = 's32[1]{0}', space=sflag, size = 0x4, scoped, tag = 'scoped memory for mamba_lm_forward.7']
    %7 = vsyncpa [#allocation4], 0
    // Predicated region
    $region2: #{mamba_lm_forward.7} parent=1 // pred_check
      _
    $region3: #{mamba_lm_forward.7} parent=1 // pred_check_branch
      %9 = sbr.rel (0) target = $region5
    $region4: #{mamba_lm_forward.7} parent=1 // pred_region
      _
    $region5: #{mamba_lm_forward.7} parent=1 // pred_fallthru
      _
    // Predicated region
    $region6: #{mamba_lm_forward.7} parent=1 // pred_check
      _
    $region7: #{mamba_lm_forward.7} parent=1 // pred_check_branch
      %11 = sbr.rel (0) target = $region9
    $region8: #{mamba_lm_forward.7} parent=1 // pred_region
      _
    $region9: #{mamba_lm_forward.7} parent=1 // pred_fallthru
      _
    %p13 = scmp.eq.s32.totalorder 0, 0
    // Predicated region
    $region10: #{mamba_lm_forward.7} parent=1 // pred_check
      %p14 = pneg %p13
    $region11: #{mamba_lm_forward.7} parent=1 // pred_check_branch
      %16 = sbr.rel (%p14) target = $region13
    $region12: #{mamba_lm_forward.7} parent=1 // pred_region
      %vm17 = vcmask 392192
      %18 = vst.msk [vmem:[#allocation2] sm:$0xff] %vm17, 0.0
      %19 = vst.msk [vmem:[#allocation2 + $0x8] sm:$0xff] %vm17, 0.0
      %20 = vst.msk [vmem:[#allocation2 + $0x10] sm:$0xff] %vm17, 0.0
      %21 = vst.msk [vmem:[#allocation2 + $0x18] sm:$0xff] %vm17, 0.0
    $region13: #{mamba_lm_forward.7} parent=1 // pred_fallthru
      _
    %v22 = vld [vmem:[#allocation2] sm:$0xff]
    %v23 = vld [vmem:[#allocation2 + $0x8] sm:$0xff]
    %v24 = vld [vmem:[#allocation2 + $0x10] sm:$0xff]
    %v25 = vld [vmem:[#allocation2 + $0x18] sm:$0xff]
    %v26 = vld [vmem:[%s0] sm:$0xf]
    %v27 = vld [vmem:[%s0 + $0x4] sm:$0xf]
    %v28 = vld [vmem:[%s0 + $0x8] sm:$0xf]
    %v29 = vld [vmem:[%s0 + $0xc] sm:$0xf]
    %v30 = vld [vmem:[%s1] sm:$0xf]
    %v31 = vld [vmem:[%s1 + $0x4] sm:$0xf]
    %v32 = vld [vmem:[%s1 + $0x8] sm:$0xf]
    %v33 = vld [vmem:[%s1 + $0xc] sm:$0xf]
    %v38 = vunpack.c.l.b16 %v26
    %v39 = vunpack.c.l.b16 %v27
    %v40 = vunpack.c.l.b16 %v28
    %v41 = vunpack.c.l.b16 %v29
    %v42 = vpack.c.b16 %v39, %v38
    %v43 = vpack.c.b16 %v41, %v40
    %v48 = vunpack.c.l.b16 %v30
    %v49 = vunpack.c.l.b16 %v31
    %v50 = vunpack.c.l.b16 %v32
    %v51 = vunpack.c.l.b16 %v33
    %v52 = vpack.c.b16 %v49, %v48
    %v53 = vpack.c.b16 %v51, %v50
    %vm56 = vcmask 261120
    %v58 = vsel %vm56, %v42, 0
    %v61 = vsel %vm56, %v43, 0
    %63 = vmatprep.subr.bf16.mxu0 0
    %64 = vmatpush1.bf16.msra.mxu0 %v52
    %65 = vmatprep.subr.bf16.mxu0 0
    %66 = vmatpush1.bf16.msra.mxu0 %v53
    %67 = vmatprep.subr.bf16.mxu0 0
    %68 = vmatpush1.bf16.msra.mxu0 0
    %69 = vmatprep.subr.bf16.mxu0 0
    %70 = vmatpush1.bf16.msra.mxu0 0
    %71 = vmatprep.subr.bf16.mxu0 0
    %72 = vmatpush1.bf16.msra.mxu0 0
    %73 = vmatprep.subr.bf16.mxu0 0
    %74 = vmatpush1.bf16.msra.mxu0 0
    %75 = vmatprep.subr.bf16.mxu0 0
    %76 = vmatpush1.bf16.msra.mxu0 0
    %77 = vmatprep.subr.bf16.mxu0 0
    %78 = vmatpush1.bf16.msra.mxu0 0
    %79 = vmatprep.subr.bf16.mxu0 0
    %80 = vmatpush1.bf16.msra.mxu0 0
    %81 = vmatprep.subr.bf16.mxu0 0
    %82 = vmatpush1.bf16.msra.mxu0 0
    %83 = vmatprep.subr.bf16.mxu0 0
    %84 = vmatpush1.bf16.msra.mxu0 0
    %85 = vmatprep.subr.bf16.mxu0 0
    %86 = vmatpush1.bf16.msra.mxu0 0
    %87 = vmatprep.subr.bf16.mxu0 0
    %88 = vmatpush1.bf16.msra.mxu0 0
    %89 = vmatprep.subr.bf16.mxu0 0
    %90 = vmatpush1.bf16.msra.mxu0 0
    %91 = vmatprep.subr.bf16.mxu0 0
    %92 = vmatpush1.bf16.msra.mxu0 0
    %93 = vmatprep.subr.bf16.mxu0 0
    %94 = vmatpush1.bf16.msra.mxu0 0
    %95 = vmatprep.mubr.bf16.mxu0 0
    %96 = vmatmul.mubr.bf16.gmra.mrb[0].mxu0 %v58
    %v97 = vpop.f32.mrb[0].mxu0
    %v98 = vadd.f32 0.0, %v97
    %v99 = vpop.f32.mrb[0].mxu0
    %v100 = vpop.f32.mrb[0].mxu0
    %v101 = vadd.f32 0.0, %v100
    %v102 = vpop.f32.mrb[0].mxu0
    %103 = vmatprep.mubr.bf16.mxu0 0
    %104 = vmatmul.mubr.bf16.gmra.mrb[0].mxu0 %v61
    %v105 = vpop.f32.mrb[0].mxu0
    %v106 = vadd.f32 0.0, %v105
    %v107 = vpop.f32.mrb[0].mxu0
    %v108 = vpop.f32.mrb[0].mxu0
    %v109 = vadd.f32 0.0, %v108
    %v110 = vpop.f32.mrb[0].mxu0
    %111 = vdwg.mxu0
    %v112 = vadd.f32 %v22, %v98
    %v113 = vadd.f32 %v23, %v101
    %v114 = vadd.f32 %v24, %v106
    %v115 = vadd.f32 %v25, %v109
    %vm116 = vcmask 392192
    %117 = vst.msk [vmem:[#allocation2] sm:$0xff] %vm116, %v112
    %118 = vst.msk [vmem:[#allocation2 + $0x8] sm:$0xff] %vm116, %v113
    %119 = vst.msk [vmem:[#allocation2 + $0x10] sm:$0xff] %vm116, %v114
    %120 = vst.msk [vmem:[#allocation2 + $0x18] sm:$0xff] %vm116, %v115
    // Predicated region
    $region14: #{mamba_lm_forward.7} parent=1 // pred_check
      %p121 = pneg %p13
    $region15: #{mamba_lm_forward.7} parent=1 // pred_check_branch
      %123 = sbr.rel (%p121) target = $region17
    $region16: #{mamba_lm_forward.7} parent=1 // pred_region
      %v124 = vld [vmem:[#allocation2] sm:$0xff]
      %v125 = vld [vmem:[#allocation2 + $0x8] sm:$0xff]
      %v126 = vld [vmem:[#allocation2 + $0x10] sm:$0xff]
      %v127 = vld [vmem:[#allocation2 + $0x18] sm:$0xff]
      %128 = vst.msk [vmem:[#allocation3] sm:$0xff] %vm116, %v124
      %129 = vst.msk [vmem:[#allocation3 + $0x8] sm:$0xff] %vm116, %v125
      %130 = vst.msk [vmem:[#allocation3 + $0x10] sm:$0xff] %vm116, %v126
      %131 = vst.msk [vmem:[#allocation3 + $0x18] sm:$0xff] %vm116, %v127
    $region17: #{mamba_lm_forward.7} parent=1 // pred_fallthru
      _
    // Predicated region
    $region18: #{mamba_lm_forward.7} parent=1 // pred_check
      _
    $region19: #{mamba_lm_forward.7} parent=1 // pred_check_branch
      %133 = sbr.rel (0) target = $region21
    $region20: #{mamba_lm_forward.7} parent=1 // pred_region
      %s135 = ssub.s32 512, 512
      %136 = vsyncadd [#allocation4], %s135
      %s137 = sshll.u32 [#allocation3], 4
      %s138 = int_to_ptr.vmem [resolvable:$true] %s137
      %143 = dma.vmem_to_hbm [thread:$0]  %s138, 512, %s2, [#allocation4], 128, 128, 8
    $region21: #{mamba_lm_forward.7} parent=1 // pred_fallthru
      _
    // Predicated region
    $region22: #{mamba_lm_forward.7} parent=1 // pred_check
      _
    $region23: #{mamba_lm_forward.7} parent=1 // pred_check_branch
      %145 = sbr.rel (0) target = $region25
    $region24: #{mamba_lm_forward.7} parent=1 // pred_region
      %146 = dma.done [#allocation4], 512
    $region25: #{mamba_lm_forward.7} parent=1 // pred_fallthru
      _
    %147 = vsyncpa [#allocation4], 1

// kernel: mamba_lm_forward.4
$region0: #{mamba_lm_forward.4}
  #allocation0 [shape = 'u32[]', space=smem, size = 0x4, offset = 0x4, fixed_abs, tag = 'smem constant byte address 0x4 - core index']
  #allocation1 [shape = 'u32[144,128]{1,0:T(1,128)}', space=vmem, size = 0x12000, scoped, tag = 'internal scratch']
  #allocation2 [shape = 'f32[16,64]{1,0:T(8,128)}', space=vmem, size = 0x2000, scoped, tag = 'scratch operand']
  #allocation3 [shape = 'f32[16,64]{1,0:T(8,128)}', space=vmem, size = 0x2000, scoped, tag = 'scratch operand']
  #allocation4 [shape = 'f32[16,16]{1,0:T(8,128)}', space=vmem, size = 0x2000, scoped, tag = 'scratch operand']
  #allocation5 [shape = 'f32[16,16]{1,0:T(8,128)}', space=vmem, size = 0x2000, scoped, tag = 'scratch operand']
  #allocation6 [shape = 'f32[16,64]{1,0:T(8,128)}', space=vmem, size = 0x2000, scoped, tag = 'scratch operand']
  #allocation7 [shape = 'f32[16,64]{1,0:T(8,128)}', space=vmem, size = 0x2000, scoped, tag = 'scratch operand']
  %s0 = inlined_call_operand.vmem [shape: f32[2,16,32], index: 0, kind: input, shape index: {}]
  %s1 = inlined_call_operand.vmem [shape: f32[2,16,32], index: 1, kind: input, shape index: {}]
  %s2 = inlined_call_operand.vmem [shape: f32[1,32], index: 2, kind: input, shape index: {}]
  %s3 = inlined_call_operand.vmem [shape: bf16[32,128], index: 3, kind: input, shape index: {}]
  %s4 = inlined_call_operand.vmem [shape: f32[4,64], index: 4, kind: input, shape index: {}]
  %s5 = inlined_call_operand.vmem [shape: f32[1,64], index: 5, kind: input, shape index: {}]
  %s6 = inlined_call_operand.vmem [shape: bf16[64,34], index: 6, kind: input, shape index: {}]
  %s7 = inlined_call_operand.vmem [shape: bf16[2,64], index: 7, kind: input, shape index: {}]
  %s8 = inlined_call_operand.vmem [shape: f32[1,64], index: 8, kind: input, shape index: {}]
  %s9 = inlined_call_operand.vmem [shape: f32[16,64], index: 9, kind: input, shape index: {}]
  %s10 = inlined_call_operand.vmem [shape: f32[1,64], index: 10, kind: input, shape index: {}]
  %s11 = inlined_call_operand.vmem [shape: bf16[64,32], index: 11, kind: input, shape index: {}]
  %s12 = inlined_call_operand.vmem [shape: f32[2,16,32], index: 12, kind: output, shape index: {0}]
  %s13 = inlined_call_operand.vmem [shape: f32[2,16,32], index: 13, kind: output, shape index: {1}]
  %14 = xla_tuple %s12, %s13
  %s15 = sld [smem:[#allocation0]]
  $region96: #{mamba_lm_forward.4} parent=0
    _
  %s17 = ssub.s32 1, %s15
  %s18 = scalar_select 0, %s17, %s15
  loop: start=0, step=1, limit=4
  $region2: #{mamba_lm_forward.4} parent=0 // loop_pre_header
    _
  $region3: #{mamba_lm_forward.4} parent=0 // loop_header
    %s20 = sphi 0, %s24
    %p21 = scmp.ge.s32.totalorder %s20, 4
    %s30 = sphi 0, %s32
    %s33 = sphi 0, %s30
    %s34 = sphi 0, %s33
    %s50 = sphi 0, %s34
    %s56 = sphi 0, %s58
    %s59 = sphi 0, %s56
    %s60 = sphi 0, %s59
    %s76 = sphi 0, %s60
    %s80 = sphi 0, %s80
    %s82 = sphi 0, %s80
    %s83 = sphi 0, %s82
    %s97 = sphi 0, %s83
    %s101 = sphi 0, %s101
    %s103 = sphi 0, %s101
    %s104 = sphi 0, %s103
    %s118 = sphi 0, %s104
    %s122 = sphi 0, %s122
    %s124 = sphi 0, %s122
    %s125 = sphi 0, %s124
    %s139 = sphi 0, %s125
    %s143 = sphi 0, %s143
    %s145 = sphi 0, %s143
    %s146 = sphi 0, %s145
    %s160 = sphi 0, %s146
    %s164 = sphi 0, %s164
    %s166 = sphi 0, %s164
    %s167 = sphi 0, %s166
    %s181 = sphi 0, %s167
    %s185 = sphi 0, %s185
    %s187 = sphi 0, %s185
    %s188 = sphi 0, %s187
    %s202 = sphi 0, %s188
    %s206 = sphi 0, %s206
    %s208 = sphi 0, %s206
    %s209 = sphi 0, %s208
    %s223 = sphi 0, %s209
    %s227 = sphi 0, %s227
    %s229 = sphi 0, %s227
    %s230 = sphi 0, %s229
    %s244 = sphi 0, %s230
    %s248 = sphi 0, %s248
    %s250 = sphi 0, %s248
    %s251 = sphi 0, %s250
    %s265 = sphi 0, %s251
    %s269 = sphi 0, %s269
    %s271 = sphi 0, %s269
    %s272 = sphi 0, %s271
    %s286 = sphi 0, %s272
    %s292 = sphi 0, %s294
    %s295 = sphi 0, %s292
    %s296 = sphi 0, %s295
    %s312 = sphi 0, %s296
    %s318 = sphi 0, %s320
    %s321 = sphi 0, %s318
    %s322 = sphi 0, %s321
    %s338 = sphi 0, %s322
  $region4: #{mamba_lm_forward.4} parent=0 // loop_header_branch
    %23 = sbr.rel (%p21) target = $region8
  $region5: #{mamba_lm_forward.4} parent=0 // loop_body
    %s25 = ssub.s32 %s20, 1
    %s26 = ssub.s32 %s20, 2
    %s27 = sadd.s32 %s20, 1
    %s28 = ssub.s32 %s20, %s27
    %p29 = scmp.eq.s32.totalorder %s28, 0
    %s31 = sadd.s32 %s30, 1
    %s32 = scalar_select %p29, %s30, %s31
    %p35 = pneg %p29
    %p36 = scmp.eq.s32.totalorder %s20, 1
    %p37 = por %p35, %p36
    %p38 = scmp.ne.s32.totalorder %s30, %s33
    %p39 = scmp.eq.s32.totalorder %s20, 0
    %p40 = por %p38, %p39
    %p41 = scmp.ne.s32.totalorder %s30, %s33
    %p42 = scmp.eq.s32.totalorder %s25, 1
    %p43 = por %p41, %p42
    %p44 = scmp.ne.s32.totalorder %s33, %s34
    %p45 = scmp.eq.s32.totalorder %s25, 0
    %p46 = por %p44, %p45
    %p47 = scmp.ne.s32.totalorder %s33, %s34
    %p48 = scmp.eq.s32.totalorder %s26, 1
    %p49 = por %p47, %p48
    %p51 = scmp.ne.s32.totalorder %s34, %s50
    %p52 = scmp.eq.s32.totalorder %s26, 0
    %p53 = por %p51, %p52
    %s54 = ssub.s32 %s20, %s27
    %p55 = scmp.eq.s32.totalorder %s54, 0
    %s57 = sadd.s32 %s56, 1
    %s58 = scalar_select %p55, %s56, %s57
    %p61 = pneg %p55
    %p62 = scmp.eq.s32.totalorder %s20, 1
    %p63 = por %p61, %p62
    %p64 = scmp.ne.s32.totalorder %s56, %s59
    %p65 = scmp.eq.s32.totalorder %s20, 0
    %p66 = por %p64, %p65
    %p67 = scmp.ne.s32.totalorder %s56, %s59
    %p68 = scmp.eq.s32.totalorder %s25, 1
    %p69 = por %p67, %p68
    %p70 = scmp.ne.s32.totalorder %s59, %s60
    %p71 = scmp.eq.s32.totalorder %s25, 0
    %p72 = por %p70, %p71
    %p73 = scmp.ne.s32.totalorder %s59, %s60
    %p74 = scmp.eq.s32.totalorder %s26, 1
    %p75 = por %p73, %p74
    %p77 = scmp.ne.s32.totalorder %s60, %s76
    %p78 = scmp.eq.s32.totalorder %s26, 0
    %p79 = por %p77, %p78
    %s81 = sadd.s32 %s80, 1
    %p84 = scmp.eq.s32.totalorder %s20, 1
    %p85 = scmp.ne.s32.totalorder %s80, %s82
    %p86 = scmp.eq.s32.totalorder %s20, 0
    %p87 = por %p85, %p86
    %p88 = scmp.ne.s32.totalorder %s80, %s82
    %p89 = scmp.eq.s32.totalorder %s25, 1
    %p90 = por %p88, %p89
    %p91 = scmp.ne.s32.totalorder %s82, %s83
    %p92 = scmp.eq.s32.totalorder %s25, 0
    %p93 = por %p91, %p92
    %p94 = scmp.ne.s32.totalorder %s82, %s83
    %p95 = scmp.eq.s32.totalorder %s26, 1
    %p96 = por %p94, %p95
    %p98 = scmp.ne.s32.totalorder %s83, %s97
    %p99 = scmp.eq.s32.totalorder %s26, 0
    %p100 = por %p98, %p99
    %s102 = sadd.s32 %s101, 1
    %p105 = scmp.eq.s32.totalorder %s20, 1
    %p106 = scmp.ne.s32.totalorder %s101, %s103
    %p107 = scmp.eq.s32.totalorder %s20, 0
    %p108 = por %p106, %p107
    %p109 = scmp.ne.s32.totalorder %s101, %s103
    %p110 = scmp.eq.s32.totalorder %s25, 1
    %p111 = por %p109, %p110
    %p112 = scmp.ne.s32.totalorder %s103, %s104
    %p113 = scmp.eq.s32.totalorder %s25, 0
    %p114 = por %p112, %p113
    %p115 = scmp.ne.s32.totalorder %s103, %s104
    %p116 = scmp.eq.s32.totalorder %s26, 1
    %p117 = por %p115, %p116
    %p119 = scmp.ne.s32.totalorder %s104, %s118
    %p120 = scmp.eq.s32.totalorder %s26, 0
    %p121 = por %p119, %p120
    %s123 = sadd.s32 %s122, 1
    %p126 = scmp.eq.s32.totalorder %s20, 1
    %p127 = scmp.ne.s32.totalorder %s122, %s124
    %p128 = scmp.eq.s32.totalorder %s20, 0
    %p129 = por %p127, %p128
    %p130 = scmp.ne.s32.totalorder %s122, %s124
    %p131 = scmp.eq.s32.totalorder %s25, 1
    %p132 = por %p130, %p131
    %p133 = scmp.ne.s32.totalorder %s124, %s125
    %p134 = scmp.eq.s32.totalorder %s25, 0
    %p135 = por %p133, %p134
    %p136 = scmp.ne.s32.totalorder %s124, %s125
    %p137 = scmp.eq.s32.totalorder %s26, 1
    %p138 = por %p136, %p137
    %p140 = scmp.ne.s32.totalorder %s125, %s139
    %p141 = scmp.eq.s32.totalorder %s26, 0
    %p142 = por %p140, %p141
    %s144 = sadd.s32 %s143, 1
    %p147 = scmp.eq.s32.totalorder %s20, 1
    %p148 = scmp.ne.s32.totalorder %s143, %s145
    %p149 = scmp.eq.s32.totalorder %s20, 0
    %p150 = por %p148, %p149
    %p151 = scmp.ne.s32.totalorder %s143, %s145
    %p152 = scmp.eq.s32.totalorder %s25, 1
    %p153 = por %p151, %p152
    %p154 = scmp.ne.s32.totalorder %s145, %s146
    %p155 = scmp.eq.s32.totalorder %s25, 0
    %p156 = por %p154, %p155
    %p157 = scmp.ne.s32.totalorder %s145, %s146
    %p158 = scmp.eq.s32.totalorder %s26, 1
    %p159 = por %p157, %p158
    %p161 = scmp.ne.s32.totalorder %s146, %s160
    %p162 = scmp.eq.s32.totalorder %s26, 0
    %p163 = por %p161, %p162
    %s165 = sadd.s32 %s164, 1
    %p168 = scmp.eq.s32.totalorder %s20, 1
    %p169 = scmp.ne.s32.totalorder %s164, %s166
    %p170 = scmp.eq.s32.totalorder %s20, 0
    %p171 = por %p169, %p170
    %p172 = scmp.ne.s32.totalorder %s164, %s166
    %p173 = scmp.eq.s32.totalorder %s25, 1
    %p174 = por %p172, %p173
    %p175 = scmp.ne.s32.totalorder %s166, %s167
    %p176 = scmp.eq.s32.totalorder %s25, 0
    %p177 = por %p175, %p176
    %p178 = scmp.ne.s32.totalorder %s166, %s167
    %p179 = scmp.eq.s32.totalorder %s26, 1
    %p180 = por %p178, %p179
    %p182 = scmp.ne.s32.totalorder %s167, %s181
    %p183 = scmp.eq.s32.totalorder %s26, 0
    %p184 = por %p182, %p183
    %s186 = sadd.s32 %s185, 1
    %p189 = scmp.eq.s32.totalorder %s20, 1
    %p190 = scmp.ne.s32.totalorder %s185, %s187
    %p191 = scmp.eq.s32.totalorder %s20, 0
    %p192 = por %p190, %p191
    %p193 = scmp.ne.s32.totalorder %s185, %s187
    %p194 = scmp.eq.s32.totalorder %s25, 1
    %p195 = por %p193, %p194
    %p196 = scmp.ne.s32.totalorder %s187, %s188
    %p197 = scmp.eq.s32.totalorder %s25, 0
    %p198 = por %p196, %p197
    %p199 = scmp.ne.s32.totalorder %s187, %s188
    %p200 = scmp.eq.s32.totalorder %s26, 1
    %p201 = por %p199, %p200
    %p203 = scmp.ne.s32.totalorder %s188, %s202
    %p204 = scmp.eq.s32.totalorder %s26, 0
    %p205 = por %p203, %p204
    %s207 = sadd.s32 %s206, 1
    %p210 = scmp.eq.s32.totalorder %s20, 1
    %p211 = scmp.ne.s32.totalorder %s206, %s208
    %p212 = scmp.eq.s32.totalorder %s20, 0
    %p213 = por %p211, %p212
    %p214 = scmp.ne.s32.totalorder %s206, %s208
    %p215 = scmp.eq.s32.totalorder %s25, 1
    %p216 = por %p214, %p215
    %p217 = scmp.ne.s32.totalorder %s208, %s209
    %p218 = scmp.eq.s32.totalorder %s25, 0
    %p219 = por %p217, %p218
    %p220 = scmp.ne.s32.totalorder %s208, %s209
    %p221 = scmp.eq.s32.totalorder %s26, 1
    %p222 = por %p220, %p221
    %p224 = scmp.ne.s32.totalorder %s209, %s223
    %p225 = scmp.eq.s32.totalorder %s26, 0
    %p226 = por %p224, %p225
    %s228 = sadd.s32 %s227, 1
    %p231 = scmp.eq.s32.totalorder %s20, 1
    %p232 = scmp.ne.s32.totalorder %s227, %s229
    %p233 = scmp.eq.s32.totalorder %s20, 0
    %p234 = por %p232, %p233
    %p235 = scmp.ne.s32.totalorder %s227, %s229
    %p236 = scmp.eq.s32.totalorder %s25, 1
    %p237 = por %p235, %p236
    %p238 = scmp.ne.s32.totalorder %s229, %s230
    %p239 = scmp.eq.s32.totalorder %s25, 0
    %p240 = por %p238, %p239
    %p241 = scmp.ne.s32.totalorder %s229, %s230
    %p242 = scmp.eq.s32.totalorder %s26, 1
    %p243 = por %p241, %p242
    %p245 = scmp.ne.s32.totalorder %s230, %s244
    %p246 = scmp.eq.s32.totalorder %s26, 0
    %p247 = por %p245, %p246
    %s249 = sadd.s32 %s248, 1
    %p252 = scmp.eq.s32.totalorder %s20, 1
    %p253 = scmp.ne.s32.totalorder %s248, %s250
    %p254 = scmp.eq.s32.totalorder %s20, 0
    %p255 = por %p253, %p254
    %p256 = scmp.ne.s32.totalorder %s248, %s250
    %p257 = scmp.eq.s32.totalorder %s25, 1
    %p258 = por %p256, %p257
    %p259 = scmp.ne.s32.totalorder %s250, %s251
    %p260 = scmp.eq.s32.totalorder %s25, 0
    %p261 = por %p259, %p260
    %p262 = scmp.ne.s32.totalorder %s250, %s251
    %p263 = scmp.eq.s32.totalorder %s26, 1
    %p264 = por %p262, %p263
    %p266 = scmp.ne.s32.totalorder %s251, %s265
    %p267 = scmp.eq.s32.totalorder %s26, 0
    %p268 = por %p266, %p267
    %s270 = sadd.s32 %s269, 1
    %p273 = scmp.eq.s32.totalorder %s20, 1
    %p274 = scmp.ne.s32.totalorder %s269, %s271
    %p275 = scmp.eq.s32.totalorder %s20, 0
    %p276 = por %p274, %p275
    %p277 = scmp.ne.s32.totalorder %s269, %s271
    %p278 = scmp.eq.s32.totalorder %s25, 1
    %p279 = por %p277, %p278
    %p280 = scmp.ne.s32.totalorder %s271, %s272
    %p281 = scmp.eq.s32.totalorder %s25, 0
    %p282 = por %p280, %p281
    %p283 = scmp.ne.s32.totalorder %s271, %s272
    %p284 = scmp.eq.s32.totalorder %s26, 1
    %p285 = por %p283, %p284
    %p287 = scmp.ne.s32.totalorder %s272, %s286
    %p288 = scmp.eq.s32.totalorder %s26, 0
    %p289 = por %p287, %p288
    %s290 = ssub.s32 %s20, %s27
    %p291 = scmp.eq.s32.totalorder %s290, 0
    %s293 = sadd.s32 %s292, 1
    %s294 = scalar_select %p291, %s292, %s293
    %p297 = pneg %p291
    %p298 = scmp.eq.s32.totalorder %s20, 1
    %p299 = por %p297, %p298
    %p300 = scmp.ne.s32.totalorder %s292, %s295
    %p301 = scmp.eq.s32.totalorder %s20, 0
    %p302 = por %p300, %p301
    %p303 = scmp.ne.s32.totalorder %s292, %s295
    %p304 = scmp.eq.s32.totalorder %s25, 1
    %p305 = por %p303, %p304
    %p306 = scmp.ne.s32.totalorder %s295, %s296
    %p307 = scmp.eq.s32.totalorder %s25, 0
    %p308 = por %p306, %p307
    %p309 = scmp.ne.s32.totalorder %s295, %s296
    %p310 = scmp.eq.s32.totalorder %s26, 1
    %p311 = por %p309, %p310
    %p313 = scmp.ne.s32.totalorder %s296, %s312
    %p314 = scmp.eq.s32.totalorder %s26, 0
    %p315 = por %p313, %p314
    %s316 = ssub.s32 %s20, %s27
    %p317 = scmp.eq.s32.totalorder %s316, 0
    %s319 = sadd.s32 %s318, 1
    %s320 = scalar_select %p317, %s318, %s319
    %p323 = pneg %p317
    %p324 = scmp.eq.s32.totalorder %s20, 1
    %p325 = por %p323, %p324
    %p326 = scmp.ne.s32.totalorder %s318, %s321
    %p327 = scmp.eq.s32.totalorder %s20, 0
    %p328 = por %p326, %p327
    %p329 = scmp.ne.s32.totalorder %s318, %s321
    %p330 = scmp.eq.s32.totalorder %s25, 1
    %p331 = por %p329, %p330
    %p332 = scmp.ne.s32.totalorder %s321, %s322
    %p333 = scmp.eq.s32.totalorder %s25, 0
    %p334 = por %p332, %p333
    %p335 = scmp.ne.s32.totalorder %s321, %s322
    %p336 = scmp.eq.s32.totalorder %s26, 1
    %p337 = por %p335, %p336
    %p339 = scmp.ne.s32.totalorder %s322, %s338
    %p340 = scmp.eq.s32.totalorder %s26, 0
    %p341 = por %p339, %p340
    %p342 = scmp.le.s32.totalorder 1, %s20
    %p343 = scmp.lt.s32.totalorder %s20, 3
    %p344 = pnand %p342, %p343
    %p345 = pneg %p344
    // Predicated region
    $region9: #{mamba_lm_forward.4} parent=5 // pred_check
      _
    $region10: #{mamba_lm_forward.4} parent=5 // pred_check_branch
      %347 = sbr.rel (%p344) target = $region12
    $region11: #{mamba_lm_forward.4} parent=5 // pred_region
      %s348 = ssub.s32 %s20, 1
      // Predicated region
      $region13: #{mamba_lm_forward.4} parent=11 // pred_check
        %p349 = pneg %p93
      $region14: #{mamba_lm_forward.4} parent=11 // pred_check_branch
        %351 = sbr.rel (%p349) target = $region16
      $region15: #{mamba_lm_forward.4} parent=11 // pred_region
        _
      $region16: #{mamba_lm_forward.4} parent=11 // pred_fallthru
        _
      // Predicated region
      $region17: #{mamba_lm_forward.4} parent=11 // pred_check
        %p352 = pneg %p114
      $region18: #{mamba_lm_forward.4} parent=11 // pred_check_branch
        %354 = sbr.rel (%p352) target = $region20
      $region19: #{mamba_lm_forward.4} parent=11 // pred_region
        _
      $region20: #{mamba_lm_forward.4} parent=11 // pred_fallthru
        _
      // Predicated region
      $region21: #{mamba_lm_forward.4} parent=11 // pred_check
        %p355 = pneg %p135
      $region22: #{mamba_lm_forward.4} parent=11 // pred_check_branch
        %357 = sbr.rel (%p355) target = $region24
      $region23: #{mamba_lm_forward.4} parent=11 // pred_region
        _
      $region24: #{mamba_lm_forward.4} parent=11 // pred_fallthru
        _
      // Predicated region
      $region25: #{mamba_lm_forward.4} parent=11 // pred_check
        %p358 = pneg %p156
      $region26: #{mamba_lm_forward.4} parent=11 // pred_check_branch
        %360 = sbr.rel (%p358) target = $region28
      $region27: #{mamba_lm_forward.4} parent=11 // pred_region
        _
      $region28: #{mamba_lm_forward.4} parent=11 // pred_fallthru
        _
      // Predicated region
      $region29: #{mamba_lm_forward.4} parent=11 // pred_check
        %p361 = pneg %p177
      $region30: #{mamba_lm_forward.4} parent=11 // pred_check_branch
        %363 = sbr.rel (%p361) target = $region32
      $region31: #{mamba_lm_forward.4} parent=11 // pred_region
        _
      $region32: #{mamba_lm_forward.4} parent=11 // pred_fallthru
        _
      // Predicated region
      $region33: #{mamba_lm_forward.4} parent=11 // pred_check
        %p364 = pneg %p198
      $region34: #{mamba_lm_forward.4} parent=11 // pred_check_branch
        %366 = sbr.rel (%p364) target = $region36
      $region35: #{mamba_lm_forward.4} parent=11 // pred_region
        _
      $region36: #{mamba_lm_forward.4} parent=11 // pred_fallthru
        _
      // Predicated region
      $region37: #{mamba_lm_forward.4} parent=11 // pred_check
        %p367 = pneg %p219
      $region38: #{mamba_lm_forward.4} parent=11 // pred_check_branch
        %369 = sbr.rel (%p367) target = $region40
      $region39: #{mamba_lm_forward.4} parent=11 // pred_region
        _
      $region40: #{mamba_lm_forward.4} parent=11 // pred_fallthru
        _
      // Predicated region
      $region41: #{mamba_lm_forward.4} parent=11 // pred_check
        %p370 = pneg %p240
      $region42: #{mamba_lm_forward.4} parent=11 // pred_check_branch
        %372 = sbr.rel (%p370) target = $region44
      $region43: #{mamba_lm_forward.4} parent=11 // pred_region
        _
      $region44: #{mamba_lm_forward.4} parent=11 // pred_fallthru
        _
      // Predicated region
      $region45: #{mamba_lm_forward.4} parent=11 // pred_check
        %p373 = pneg %p261
      $region46: #{mamba_lm_forward.4} parent=11 // pred_check_branch
        %375 = sbr.rel (%p373) target = $region48
      $region47: #{mamba_lm_forward.4} parent=11 // pred_region
        _
      $region48: #{mamba_lm_forward.4} parent=11 // pred_fallthru
        _
      // Predicated region
      $region49: #{mamba_lm_forward.4} parent=11 // pred_check
        %p376 = pneg %p282
      $region50: #{mamba_lm_forward.4} parent=11 // pred_check_branch
        %378 = sbr.rel (%p376) target = $region52
      $region51: #{mamba_lm_forward.4} parent=11 // pred_region
        _
      $region52: #{mamba_lm_forward.4} parent=11 // pred_fallthru
        _
    $region12: #{mamba_lm_forward.4} parent=5 // pred_fallthru
      _
    %p379 = scmp.lt.s32.totalorder %s20, 2
    // Predicated region
    $region53: #{mamba_lm_forward.4} parent=5 // pred_check
      %p380 = pneg %p379
    $region54: #{mamba_lm_forward.4} parent=5 // pred_check_branch
      %382 = sbr.rel (%p380) target = $region56
    $region55: #{mamba_lm_forward.4} parent=5 // pred_region
      // Predicated region
      $region57: #{mamba_lm_forward.4} parent=55 // pred_check
        %p383 = pneg %p40
      $region58: #{mamba_lm_forward.4} parent=55 // pred_check_branch
        %385 = sbr.rel (%p383) target = $region60
      $region59: #{mamba_lm_forward.4} parent=55 // pred_region
        %p386 = scmp.lt.s32.totalorder %s20, 1
        %s387 = scalar_select %p386, %s20, 1
        %s388 = smul.addr %s387, 2
        %s389 = smul.addr %s388, 8
        %s390 = scalar_lea.vmem %s0, %s389
      $region60: #{mamba_lm_forward.4} parent=55 // pred_fallthru
        _
      // Predicated region
      $region61: #{mamba_lm_forward.4} parent=55 // pred_check
        %p391 = pneg %p66
      $region62: #{mamba_lm_forward.4} parent=55 // pred_check_branch
        %393 = sbr.rel (%p391) target = $region64
      $region63: #{mamba_lm_forward.4} parent=55 // pred_region
        %p394 = scmp.lt.s32.totalorder %s20, 1
        %s395 = scalar_select %p394, %s20, 1
        %s396 = smul.addr %s395, 2
        %s397 = smul.addr %s396, 8
        %s398 = scalar_lea.vmem %s1, %s397
      $region64: #{mamba_lm_forward.4} parent=55 // pred_fallthru
        _
    $region56: #{mamba_lm_forward.4} parent=5 // pred_fallthru
      _
    %p399 = scmp.le.s32.totalorder 1, %s20
    %p400 = scmp.lt.s32.totalorder %s20, 3
    %p401 = pnand %p399, %p400
    %p402 = pneg %p401
    // Predicated region
    $region65: #{mamba_lm_forward.4} parent=5 // pred_check
      _
    $region66: #{mamba_lm_forward.4} parent=5 // pred_check_branch
      %404 = sbr.rel (%p401) target = $region68
    $region67: #{mamba_lm_forward.4} parent=5 // pred_region
      %s405 = ssub.s32 %s20, 1
      %p406 = scmp.lt.s32.totalorder %s25, 1
      %s407 = scalar_select %p406, %s25, 1
      %s408 = smul.addr %s407, 2
      %s409 = smul.addr %s408, 8
      %s410 = scalar_lea.vmem %s0, %s409
      %p411 = pneg %p46
      %p412 = pneg %p43
      %p413 = scmp.lt.s32.totalorder %s25, 1
      %s414 = scalar_select %p413, %s25, 1
      %s415 = smul.addr %s414, 2
      %s416 = smul.addr %s415, 8
      %s417 = scalar_lea.vmem %s1, %s416
      %p418 = pneg %p72
      %p419 = pneg %p69
      %p420 = pneg %p93
      %p421 = pneg %p90
      %p422 = pneg %p114
      %p423 = pneg %p111
      %p424 = pneg %p135
      %p425 = pneg %p132
      %p426 = pneg %p156
      %p427 = pneg %p153
      %p428 = pneg %p177
      %p429 = pneg %p174
      %p430 = pneg %p198
      %p431 = pneg %p195
      %p432 = pneg %p219
      %p433 = pneg %p216
      %p434 = pneg %p240
      %p435 = pneg %p237
      %p436 = pneg %p261
      %p437 = pneg %p258
      %p438 = pneg %p282
      %p439 = pneg %p279
      %p440 = pneg %p308
      %p441 = pneg %p305
      %p442 = scmp.lt.s32.totalorder %s25, 1
      %s443 = scalar_select %p442, %s25, 1
      %s444 = smul.addr %s443, 2
      %s445 = smul.addr %s444, 8
      %s446 = scalar_lea.vmem %s12, %s445
      %p447 = pneg %p334
      %p448 = pneg %p331
      %p449 = scmp.lt.s32.totalorder %s25, 1
      %s450 = scalar_select %p449, %s25, 1
      %s451 = smul.addr %s450, 2
      %s452 = smul.addr %s451, 8
      %s453 = scalar_lea.vmem %s13, %s452
      %p454 = scmp.lt.s32.totalorder %s25, 1
      %s455 = scalar_select %p454, %s25, 1
      %s456 = smul.addr %s455, 2
      %s457 = smul.addr %s456, 8
      %s458 = scalar_lea.vmem %s0, %s457
      %p459 = scmp.lt.s32.totalorder %s25, 1
      %s460 = scalar_select %p459, %s25, 1
      %s461 = smul.addr %s460, 2
      %s462 = smul.addr %s461, 8
      %s463 = scalar_lea.vmem %s1, %s462
      %p464 = scmp.lt.s32.totalorder %s25, 1
      %s465 = scalar_select %p464, %s25, 1
      %s466 = smul.addr %s465, 2
      %s467 = smul.addr %s466, 8
      %s468 = scalar_lea.vmem %s12, %s467
      %p469 = scmp.lt.s32.totalorder %s25, 1
      %s470 = scalar_select %p469, %s25, 1
      %s471 = smul.addr %s470, 2
      %s472 = smul.addr %s471, 8
      %s473 = scalar_lea.vmem %s13, %s472
      %v475 = vld [vmem:[%s458] sm:$0xff]
      %v476 = vld [vmem:[%s458 + $0x8] sm:$0xff]
      %v477 = vld [vmem:[%s463] sm:$0xff]
      %v478 = vld [vmem:[%s463 + $0x8] sm:$0xff]
      %v479 = vadd.f32 %v475, %v477
      %v480 = vadd.f32 %v476, %v478
      %vm481 = vcmask 261120
      %482 = vst.msk [vmem:[%s473] sm:$0xff] %vm481, %v479
      %483 = vst.msk [vmem:[%s473 + $0x8] sm:$0xff] %vm481, %v480
      %v484 = vmul.f32 %v479, %v479
      %v485 = vmul.f32 %v480, %v480
      %v486 = vsel %vm481, %v484, 0.0
      %487 = vadd.xlane.f32.xlu0 %v486
      %v488 = vpop.xlane.xlu0 %487
      %v489 = vsel %vm481, %v485, 0.0
      %490 = vadd.xlane.f32.xlu0 %v489
      %v491 = vpop.xlane.xlu0 %490
      %v492 = vrcp.pop 32.0
      %v493 = vmul.f32 %v488, %v492
      %v494 = vmul.f32 %v491, %v492
      %v495 = vadd.f32 %v493, 1e-05
      %v496 = vadd.f32 %v494, 1e-05
      %v497 = vrsqrt.pop %v495
      %v498 = vrsqrt.pop %v496
      %v499 = vmul.f32 %v479, %v497
      %v500 = vmul.f32 %v480, %v498
      %v501 = vld [vmem:[%s2] sm:$0x1]
      %v503 = vlaneseq
      %v504 = vshrl.u32 %v503, 7
      %v505 = vsub.s32 0, %v504
      %v506 = vrot.slane %v501, %v505
      %v508 = vmul.f32 %v499, %v506
      %v509 = vmul.f32 %v500, %v506
      %v510 = vpack.c.bf16 %v509, %v508
      %v511 = vld [vmem:[%s3] sm:$0xf]
      %v512 = vld [vmem:[%s3 + $0x4] sm:$0xf]
      %v513 = vld [vmem:[%s3 + $0x8] sm:$0xf]
      %v514 = vld [vmem:[%s3 + $0xc] sm:$0xf]
      %v519 = vunpack.c.l.b16 %v511
      %v520 = vunpack.c.l.b16 %v512
      %v521 = vunpack.c.l.b16 %v513
      %v522 = vunpack.c.l.b16 %v514
      %v523 = vpack.c.b16 %v520, %v519
      %v524 = vpack.c.b16 %v522, %v521
      %v528 = vsel %vm481, %v510, 0
      %530 = vmatprep.subr.bf16.mxu0 0
      %531 = vmatpush1.bf16.msra.mxu0 %v523
      %532 = vmatprep.subr.bf16.mxu0 0
      %533 = vmatpush1.bf16.msra.mxu0 %v524
      %534 = vmatprep.subr.bf16.mxu0 0
      %535 = vmatpush1.bf16.msra.mxu0 0
      %536 = vmatprep.subr.bf16.mxu0 0
      %537 = vmatpush1.bf16.msra.mxu0 0
      %538 = vmatprep.subr.bf16.mxu0 0
      %539 = vmatpush1.bf16.msra.mxu0 0
      %540 = vmatprep.subr.bf16.mxu0 0
      %541 = vmatpush1.bf16.msra.mxu0 0
      %542 = vmatprep.subr.bf16.mxu0 0
      %543 = vmatpush1.bf16.msra.mxu0 0
      %544 = vmatprep.subr.bf16.mxu0 0
      %545 = vmatpush1.bf16.msra.mxu0 0
      %546 = vmatprep.subr.bf16.mxu0 0
      %547 = vmatpush1.bf16.msra.mxu0 0
      %548 = vmatprep.subr.bf16.mxu0 0
      %549 = vmatpush1.bf16.msra.mxu0 0
      %550 = vmatprep.subr.bf16.mxu0 0
      %551 = vmatpush1.bf16.msra.mxu0 0
      %552 = vmatprep.subr.bf16.mxu0 0
      %553 = vmatpush1.bf16.msra.mxu0 0
      %554 = vmatprep.subr.bf16.mxu0 0
      %555 = vmatpush1.bf16.msra.mxu0 0
      %556 = vmatprep.subr.bf16.mxu0 0
      %557 = vmatpush1.bf16.msra.mxu0 0
      %558 = vmatprep.subr.bf16.mxu0 0
      %559 = vmatpush1.bf16.msra.mxu0 0
      %560 = vmatprep.subr.bf16.mxu0 0
      %561 = vmatpush1.bf16.msra.mxu0 0
      %562 = vmatprep.mubr.bf16.mxu0 0
      %563 = vmatmul.mubr.bf16.gmra.mrb[0].mxu0 %v528
      %v564 = vpop.f32.mrb[0].mxu0
      %v565 = vadd.f32 0.0, %v564
      %v566 = vpop.f32.mrb[0].mxu0
      %v567 = vpop.f32.mrb[0].mxu0
      %v568 = vadd.f32 0.0, %v567
      %v569 = vpop.f32.mrb[0].mxu0
      %570 = vdwg.mxu0
      %v571 = vld [vmem:[%s4 + $0x3] sm:$0x1]
      %v572 = vlaneseq
      %v573 = vshrl.u32 %v572, 7
      %v574 = vsub.s32 0, %v573
      %v575 = vrot.slane %v571, %v574
      %v576 = vmul.f32 %v565, %v575
      %v577 = vmul.f32 %v568, %v575
      %vm580 = vcmask 1040384
      %v581 = vrot.slane %v565, 7
      %v582 = vrot.slane %v568, 7
      %v583 = vsel %vm580, %v581, %v582
      %v586 = vsel %vm580, 0.0, %v581
      %v587 = vld [vmem:[%s4 + $0x2] sm:$0x1]
      %v588 = vlaneseq
      %v589 = vshrl.u32 %v588, 7
      %v590 = vsub.s32 0, %v589
      %v591 = vrot.slane %v587, %v590
      %v592 = vmul.f32 %v586, %v591
      %v593 = vmul.f32 %v583, %v591
      %v594 = vadd.f32 %v576, %v592
      %v595 = vadd.f32 %v577, %v593
      %vm596 = vcmask 1041408
      %v597 = vrot.slane %v565, 6
      %v598 = vrot.slane %v568, 6
      %v599 = vsel %vm596, %v597, %v598
      %v602 = vsel %vm596, 0.0, %v597
      %v603 = vld [vmem:[%s4 + $0x1] sm:$0x1]
      %v604 = vlaneseq
      %v605 = vshrl.u32 %v604, 7
      %v606 = vsub.s32 0, %v605
      %v607 = vrot.slane %v603, %v606
      %v608 = vmul.f32 %v602, %v607
      %v609 = vmul.f32 %v599, %v607
      %v610 = vadd.f32 %v594, %v608
      %v611 = vadd.f32 %v595, %v609
      %vm612 = vcmask 1042432
      %v613 = vrot.slane %v565, 5
      %v614 = vrot.slane %v568, 5
      %v615 = vsel %vm612, %v613, %v614
      %v618 = vsel %vm612, 0.0, %v613
      %v619 = vld [vmem:[%s4] sm:$0x1]
      %v620 = vlaneseq
      %v621 = vshrl.u32 %v620, 7
      %v622 = vsub.s32 0, %v621
      %v623 = vrot.slane %v619, %v622
      %v624 = vmul.f32 %v618, %v623
      %v625 = vmul.f32 %v615, %v623
      %v626 = vadd.f32 %v610, %v624
      %v627 = vadd.f32 %v611, %v625
      %v628 = vld [vmem:[%s5] sm:$0x1]
      %v630 = vlaneseq
      %v631 = vshrl.u32 %v630, 7
      %v632 = vsub.s32 0, %v631
      %v633 = vrot.slane %v628, %v632
      %v635 = vadd.f32 %v626, %v633
      %v636 = vadd.f32 %v627, %v633
      %v637 = vsub.f32 0.0, %v635
      %v638 = vsub.f32 0.0, %v636
      %v639 = vmul.f32 %v637, 1.442695
      %v640 = vpow.pop %v639
      %v641 = vmul.f32 %v638, 1.442695
      %v642 = vpow.pop %v641
      %v643 = vadd.f32 %v640, 1.0
      %v644 = vadd.f32 %v642, 1.0
      %v645 = vrcp.pop %v643
      %v646 = vmul.f32 1.0, %v645
      %v647 = vrcp.pop %v644
      %v648 = vmul.f32 1.0, %v647
      %v649 = vmul.f32 %v635, %v646
      %v650 = vmul.f32 %v636, %v648
      %v651 = vpack.c.bf16 %v650, %v649
      %v652 = vld [vmem:[%s6] sm:$0xf]
      %v653 = vld [vmem:[%s6 + $0x4] sm:$0xf]
      %v654 = vld [vmem:[%s6 + $0x8] sm:$0xf]
      %v655 = vld [vmem:[%s6 + $0xc] sm:$0xf]
      %v656 = vld [vmem:[%s6 + $0x10] sm:$0xf]
      %v657 = vld [vmem:[%s6 + $0x14] sm:$0xf]
      %v658 = vld [vmem:[%s6 + $0x18] sm:$0xf]
      %v659 = vld [vmem:[%s6 + $0x1c] sm:$0xf]
      %v668 = vunpack.c.l.b16 %v652
      %v669 = vunpack.c.l.b16 %v653
      %v670 = vunpack.c.l.b16 %v654
      %v671 = vunpack.c.l.b16 %v655
      %v672 = vunpack.c.l.b16 %v656
      %v673 = vunpack.c.l.b16 %v657
      %v674 = vunpack.c.l.b16 %v658
      %v675 = vunpack.c.l.b16 %v659
      %v676 = vpack.c.b16 %v669, %v668
      %v677 = vpack.c.b16 %v671, %v670
      %v678 = vpack.c.b16 %v673, %v672
      %v679 = vpack.c.b16 %v675, %v674
      %vm684 = vcmask 523264
      %v686 = vsel %vm684, %v651, 0
      %688 = vmatprep.subr.bf16.mxu0 0
      %689 = vmatpush1.bf16.msra.mxu0 %v676
      %690 = vmatprep.subr.bf16.mxu0 0
      %691 = vmatpush1.bf16.msra.mxu0 %v677
      %692 = vmatprep.subr.bf16.mxu0 0
      %693 = vmatpush1.bf16.msra.mxu0 %v678
      %694 = vmatprep.subr.bf16.mxu0 0
      %695 = vmatpush1.bf16.msra.mxu0 %v679
      %696 = vmatprep.subr.bf16.mxu0 0
      %697 = vmatpush1.bf16.msra.mxu0 0
      %698 = vmatprep.subr.bf16.mxu0 0
      %699 = vmatpush1.bf16.msra.mxu0 0
      %700 = vmatprep.subr.bf16.mxu0 0
      %701 = vmatpush1.bf16.msra.mxu0 0
      %702 = vmatprep.subr.bf16.mxu0 0
      %703 = vmatpush1.bf16.msra.mxu0 0
      %704 = vmatprep.subr.bf16.mxu0 0
      %705 = vmatpush1.bf16.msra.mxu0 0
      %706 = vmatprep.subr.bf16.mxu0 0
      %707 = vmatpush1.bf16.msra.mxu0 0
      %708 = vmatprep.subr.bf16.mxu0 0
      %709 = vmatpush1.bf16.msra.mxu0 0
      %710 = vmatprep.subr.bf16.mxu0 0
      %711 = vmatpush1.bf16.msra.mxu0 0
      %712 = vmatprep.subr.bf16.mxu0 0
      %713 = vmatpush1.bf16.msra.mxu0 0
      %714 = vmatprep.subr.bf16.mxu0 0
      %715 = vmatpush1.bf16.msra.mxu0 0
      %716 = vmatprep.subr.bf16.mxu0 0
      %717 = vmatpush1.bf16.msra.mxu0 0
      %718 = vmatprep.subr.bf16.mxu0 0
      %719 = vmatpush1.bf16.msra.mxu0 0
      %720 = vmatprep.mubr.bf16.mxu0 0
      %721 = vmatmul.mubr.bf16.gmra.mrb[0].mxu0 %v686
      %v722 = vpop.f32.mrb[0].mxu0
      %v723 = vadd.f32 0.0, %v722
      %v724 = vpop.f32.mrb[0].mxu0
      %v725 = vpop.f32.mrb[0].mxu0
      %v726 = vadd.f32 0.0, %v725
      %v727 = vpop.f32.mrb[0].mxu0
      %728 = vdwg.mxu0
      %v729 = vpack.c.bf16 %v726, %v723
      %v730 = vld [vmem:[%s7] sm:$0x1]
      %v731 = vld [vmem:[%s8] sm:$0x1]
      %v733 = vlaneseq
      %v734 = vshrl.u32 %v733, 7
      %v735 = vsub.s32 0, %v734
      %v736 = vrot.slane %v731, %v735
      %vm738 = vcmask 15360
      %v740 = vsel %vm738, %v729, 0
      %v743 = vsel %vm580, %v730, 0
      %745 = vmatprep.subr.bf16.mxu0 0
      %746 = vmatpush1.bf16.msra.mxu0 %v743
      %747 = vmatprep.subr.bf16.mxu0 0
      %748 = vmatpush1.bf16.msra.mxu0 0
      %749 = vmatprep.subr.bf16.mxu0 0
      %750 = vmatpush1.bf16.msra.mxu0 0
      %751 = vmatprep.subr.bf16.mxu0 0
      %752 = vmatpush1.bf16.msra.mxu0 0
      %753 = vmatprep.subr.bf16.mxu0 0
      %754 = vmatpush1.bf16.msra.mxu0 0
      %755 = vmatprep.subr.bf16.mxu0 0
      %756 = vmatpush1.bf16.msra.mxu0 0
      %757 = vmatprep.subr.bf16.mxu0 0
      %758 = vmatpush1.bf16.msra.mxu0 0
      %759 = vmatprep.subr.bf16.mxu0 0
      %760 = vmatpush1.bf16.msra.mxu0 0
      %761 = vmatprep.subr.bf16.mxu0 0
      %762 = vmatpush1.bf16.msra.mxu0 0
      %763 = vmatprep.subr.bf16.mxu0 0
      %764 = vmatpush1.bf16.msra.mxu0 0
      %765 = vmatprep.subr.bf16.mxu0 0
      %766 = vmatpush1.bf16.msra.mxu0 0
      %767 = vmatprep.subr.bf16.mxu0 0
      %768 = vmatpush1.bf16.msra.mxu0 0
      %769 = vmatprep.subr.bf16.mxu0 0
      %770 = vmatpush1.bf16.msra.mxu0 0
      %771 = vmatprep.subr.bf16.mxu0 0
      %772 = vmatpush1.bf16.msra.mxu0 0
      %773 = vmatprep.subr.bf16.mxu0 0
      %774 = vmatpush1.bf16.msra.mxu0 0
      %775 = vmatprep.subr.bf16.mxu0 0
      %776 = vmatpush1.bf16.msra.mxu0 0
      %777 = vmatprep.mubr.bf16.mxu0 0
      %778 = vmatmul.mubr.bf16.gmra.mrb[0].mxu0 %v740
      %v779 = vpop.f32.mrb[0].mxu0
      %v780 = vadd.f32 %v736, %v779
      %v781 = vpop.f32.mrb[0].mxu0
      %v782 = vpop.f32.mrb[0].mxu0
      %v783 = vadd.f32 %v736, %v782
      %v784 = vpop.f32.mrb[0].mxu0
      %785 = vdwg.mxu0
      %vm786 = vcmp.gt.f32.partialorder %v780, 20.0
      %vm787 = vcmp.gt.f32.partialorder %v783, 20.0
      %v788 = vmul.f32 %v780, 1.442695
      %v789 = vpow.pop %v788
      %v790 = vmul.f32 %v783, 1.442695
      %v791 = vpow.pop %v790
      %v792 = vadd.f32 %v789, 1.0
      %v793 = vadd.f32 %v791, 1.0
      %v794 = vlog2.pop %v792
      %v795 = vmul.f32 %v794, 0.6931472
      %v796 = vlog2.pop %v793
      %v797 = vmul.f32 %v796, 0.6931472
      %v798 = vsel %vm786, %v780, %v795
      %v799 = vsel %vm787, %v783, %v797
      %800 = vst.msk [vmem:[#allocation2] sm:$0xff] %vm684, %v798
      %801 = vst.msk [vmem:[#allocation2 + $0x8] sm:$0xff] %vm684, %v799
      %v802 = vmul.f32 %v798, %v649
      %v803 = vmul.f32 %v799, %v650
      %804 = vst.msk [vmem:[#allocation3] sm:$0xff] %vm684, %v802
      %805 = vst.msk [vmem:[#allocation3 + $0x8] sm:$0xff] %vm684, %v803
      %808 = vrot.lane.b32.xlu0 %v723, 126
      %v809 = vpop.permute.xlu0 %808
      %810 = vrot.lane.b32.xlu0 %v726, 126
      %v811 = vpop.permute.xlu0 %810
      %vm814 = vcmask 130048
      %815 = vst.msk [vmem:[#allocation4] sm:$0xff] %vm814, %v809
      %816 = vst.msk [vmem:[#allocation4 + $0x8] sm:$0xff] %vm814, %v811
      %817 = vrot.lane.b32.xlu0 %v723, 110
      %v818 = vpop.permute.xlu0 %817
      %819 = vrot.lane.b32.xlu0 %v726, 110
      %v820 = vpop.permute.xlu0 %819
      %823 = vst.msk [vmem:[#allocation5] sm:$0xff] %vm814, %v818
      %824 = vst.msk [vmem:[#allocation5 + $0x8] sm:$0xff] %vm814, %v820
      %v825 = vld [vmem:[%s9] sm:$0xff]
      %v826 = vld [vmem:[%s9 + $0x8] sm:$0xff]
      %v827 = vmul.f32 %v825, 1.442695
      %v828 = vpow.pop %v827
      %v829 = vmul.f32 %v826, 1.442695
      %v830 = vpow.pop %v829
      %v831 = vsub.f32 0.0, %v828
      %v832 = vsub.f32 0.0, %v830
      %833 = vst.msk [vmem:[#allocation7] sm:$0xff] %vm684, 0.0
      %834 = vst.msk [vmem:[#allocation7 + $0x8] sm:$0xff] %vm684, 0.0
      loop: start=0, step=1, limit=2
      $region69: #{mamba_lm_forward.4} parent=67 // loop_pre_header
        _
      $region70: #{mamba_lm_forward.4} parent=67 // loop_header
        %s836 = sphi 0, %s840
        %p837 = scmp.ge.s32.totalorder %s836, 2
      $region71: #{mamba_lm_forward.4} parent=67 // loop_header_branch
        %839 = sbr.rel (%p837) target = $region75
      $region72: #{mamba_lm_forward.4} parent=67 // loop_body
        %s841 = smul.u32 %s836, 8
        %s842 = scalar_lea.vmem [#allocation2], %s841
        %v843 = vld [vmem:[%s842] sm:$0xff]
        %s844 = scalar_lea.vmem [#allocation3], %s841
        %v845 = vld [vmem:[%s844] sm:$0xff]
        %s846 = scalar_lea.vmem [#allocation4], %s841
        %v847 = vld [vmem:[%s846] sm:$0xff]
        %s848 = scalar_lea.vmem [#allocation5], %s841
        %v849 = vld [vmem:[%s848] sm:$0xff]
        %v851 = vcombine.high %v843, %v843
        %v853 = vunpack.c.l.s4 1966171168
        %v854 = vunpack.c.0.s8 %v853
        %v855 = vlaneseq
        %v856 = vshrl.u32 %v855, 7
        %v857 = vsub.s32 %v854, %v856
        %v858 = vrot.slane %v843, %v857
        %v860 = vunpack.c.l.s4 1966171168
        %v861 = vunpack.c.0.s8 %v860
        %v862 = vlaneseq
        %v863 = vshrl.u32 %v862, 7
        %v864 = vsub.s32 %v861, %v863
        %v865 = vrot.slane %v851, %v864
        %v866 = vcombine.high %v858, %v858
        %v867 = vcombine.high %v865, %v865
        %v869 = vunpack.c.l.s4 1966171168
        %v870 = vunpack.c.0.s8 %v869
        %v871 = vlaneseq
        %v872 = vshrl.u32 %v871, 7
        %v873 = vsub.s32 %v870, %v872
        %v874 = vrot.slane %v858, %v873
        %v876 = vunpack.c.l.s4 1966171168
        %v877 = vunpack.c.0.s8 %v876
        %v878 = vlaneseq
        %v879 = vshrl.u32 %v878, 7
        %v880 = vsub.s32 %v877, %v879
        %v881 = vrot.slane %v865, %v880
        %v883 = vunpack.c.l.s4 1966171168
        %v884 = vunpack.c.0.s8 %v883
        %v885 = vlaneseq
        %v886 = vshrl.u32 %v885, 7
        %v887 = vsub.s32 %v884, %v886
        %v888 = vrot.slane %v866, %v887
        %v890 = vunpack.c.l.s4 1966171168
        %v891 = vunpack.c.0.s8 %v890
        %v892 = vlaneseq
        %v893 = vshrl.u32 %v892, 7
        %v894 = vsub.s32 %v891, %v893
        %v895 = vrot.slane %v867, %v894
        %v896 = vcombine.high %v874, %v874
        %v897 = vcombine.high %v881, %v881
        %v898 = vcombine.high %v888, %v888
        %v899 = vcombine.high %v895, %v895
        %v900 = vlaneseq
        %v901 = vshrl.u32 %v900, 7
        %v902 = vsub.s32 0, %v901
        %v903 = vrot.slane %v874, %v902
        %v904 = vlaneseq
        %v905 = vshrl.u32 %v904, 7
        %v906 = vsub.s32 0, %v905
        %v907 = vrot.slane %v888, %v906
        %v908 = vlaneseq
        %v909 = vshrl.u32 %v908, 7
        %v910 = vsub.s32 0, %v909
        %v911 = vrot.slane %v896, %v910
        %v912 = vlaneseq
        %v913 = vshrl.u32 %v912, 7
        %v914 = vsub.s32 0, %v913
        %v915 = vrot.slane %v898, %v914
        %v916 = vlaneseq
        %v917 = vshrl.u32 %v916, 7
        %v918 = vsub.s32 0, %v917
        %v919 = vrot.slane %v881, %v918
        %v920 = vlaneseq
        %v921 = vshrl.u32 %v920, 7
        %v922 = vsub.s32 0, %v921
        %v923 = vrot.slane %v895, %v922
        %v924 = vlaneseq
        %v925 = vshrl.u32 %v924, 7
        %v926 = vsub.s32 0, %v925
        %v927 = vrot.slane %v897, %v926
        %v928 = vlaneseq
        %v929 = vshrl.u32 %v928, 7
        %v930 = vsub.s32 0, %v929
        %v931 = vrot.slane %v899, %v930
        %v940 = vmul.f32 %v903, %v831
        %v941 = vmul.f32 %v903, %v832
        %v942 = vmul.f32 %v907, %v831
        %v943 = vmul.f32 %v907, %v832
        %v944 = vmul.f32 %v911, %v831
        %v945 = vmul.f32 %v911, %v832
        %v946 = vmul.f32 %v915, %v831
        %v947 = vmul.f32 %v915, %v832
        %v948 = vmul.f32 %v919, %v831
        %v949 = vmul.f32 %v919, %v832
        %v950 = vmul.f32 %v923, %v831
        %v951 = vmul.f32 %v923, %v832
        %v952 = vmul.f32 %v927, %v831
        %v953 = vmul.f32 %v927, %v832
        %v954 = vmul.f32 %v931, %v831
        %v955 = vmul.f32 %v931, %v832
        %v956 = vmul.f32 %v940, 1.442695
        %v957 = vpow.pop %v956
        %v958 = vmul.f32 %v941, 1.442695
        %v959 = vpow.pop %v958
        %v960 = vmul.f32 %v942, 1.442695
        %v961 = vpow.pop %v960
        %v962 = vmul.f32 %v943, 1.442695
        %v963 = vpow.pop %v962
        %v964 = vmul.f32 %v944, 1.442695
        %v965 = vpow.pop %v964
        %v966 = vmul.f32 %v945, 1.442695
        %v967 = vpow.pop %v966
        %v968 = vmul.f32 %v946, 1.442695
        %v969 = vpow.pop %v968
        %v970 = vmul.f32 %v947, 1.442695
        %v971 = vpow.pop %v970
        %v972 = vmul.f32 %v948, 1.442695
        %v973 = vpow.pop %v972
        %v974 = vmul.f32 %v949, 1.442695
        %v975 = vpow.pop %v974
        %v976 = vmul.f32 %v950, 1.442695
        %v977 = vpow.pop %v976
        %v978 = vmul.f32 %v951, 1.442695
        %v979 = vpow.pop %v978
        %v980 = vmul.f32 %v952, 1.442695
        %v981 = vpow.pop %v980
        %v982 = vmul.f32 %v953, 1.442695
        %v983 = vpow.pop %v982
        %v984 = vmul.f32 %v954, 1.442695
        %v985 = vpow.pop %v984
        %v986 = vmul.f32 %v955, 1.442695
        %v987 = vpow.pop %v986
        %v988 = vlaneseq
        %v989 = vshrl.u32 %v988, 7
        %v990 = vsub.s32 0, %v989
        %v991 = vrot.slane %v847, %v990
        %993 = vbcast.lane.b32.xlu0 %v991, 256
        %v994 = vpop.permute.xlu0 %993
        %s996 = sor.u32 256, 8
        %997 = vbcast.lane.b32.xlu0 %v991, %s996
        %v998 = vpop.permute.xlu0 %997
        %v999 = vlaneseq
        %v1000 = vshrl.u32 %v999, 7
        %v1001 = vsub.s32 1, %v1000
        %v1002 = vrot.slane %v847, %v1001
        %1004 = vbcast.lane.b32.xlu0 %v1002, 256
        %v1005 = vpop.permute.xlu0 %1004
        %s1007 = sor.u32 256, 8
        %1008 = vbcast.lane.b32.xlu0 %v1002, %s1007
        %v1009 = vpop.permute.xlu0 %1008
        %v1010 = vlaneseq
        %v1011 = vshrl.u32 %v1010, 7
        %v1012 = vsub.s32 2, %v1011
        %v1013 = vrot.slane %v847, %v1012
        %1015 = vbcast.lane.b32.xlu0 %v1013, 256
        %v1016 = vpop.permute.xlu0 %1015
        %s1018 = sor.u32 256, 8
        %1019 = vbcast.lane.b32.xlu0 %v1013, %s1018
        %v1020 = vpop.permute.xlu0 %1019
        %v1021 = vlaneseq
        %v1022 = vshrl.u32 %v1021, 7
        %v1023 = vsub.s32 3, %v1022
        %v1024 = vrot.slane %v847, %v1023
        %1026 = vbcast.lane.b32.xlu0 %v1024, 256
        %v1027 = vpop.permute.xlu0 %1026
        %s1029 = sor.u32 256, 8
        %1030 = vbcast.lane.b32.xlu0 %v1024, %s1029
        %v1031 = vpop.permute.xlu0 %1030
        %v1032 = vlaneseq
        %v1033 = vshrl.u32 %v1032, 7
        %v1034 = vsub.s32 4, %v1033
        %v1035 = vrot.slane %v847, %v1034
        %1037 = vbcast.lane.b32.xlu0 %v1035, 256
        %v1038 = vpop.permute.xlu0 %1037
        %s1040 = sor.u32 256, 8
        %1041 = vbcast.lane.b32.xlu0 %v1035, %s1040
        %v1042 = vpop.permute.xlu0 %1041
        %v1043 = vlaneseq
        %v1044 = vshrl.u32 %v1043, 7
        %v1045 = vsub.s32 5, %v1044
        %v1046 = vrot.slane %v847, %v1045
        %1048 = vbcast.lane.b32.xlu0 %v1046, 256
        %v1049 = vpop.permute.xlu0 %1048
        %s1051 = sor.u32 256, 8
        %1052 = vbcast.lane.b32.xlu0 %v1046, %s1051
        %v1053 = vpop.permute.xlu0 %1052
        %v1054 = vlaneseq
        %v1055 = vshrl.u32 %v1054, 7
        %v1056 = vsub.s32 6, %v1055
        %v1057 = vrot.slane %v847, %v1056
        %1059 = vbcast.lane.b32.xlu0 %v1057, 256
        %v1060 = vpop.permute.xlu0 %1059
        %s1062 = sor.u32 256, 8
        %1063 = vbcast.lane.b32.xlu0 %v1057, %s1062
        %v1064 = vpop.permute.xlu0 %1063
        %v1065 = vlaneseq
        %v1066 = vshrl.u32 %v1065, 7
        %v1067 = vsub.s32 7, %v1066
        %v1068 = vrot.slane %v847, %v1067
        %1070 = vbcast.lane.b32.xlu0 %v1068, 256
        %v1071 = vpop.permute.xlu0 %1070
        %s1073 = sor.u32 256, 8
        %1074 = vbcast.lane.b32.xlu0 %v1068, %s1073
        %v1075 = vpop.permute.xlu0 %1074
        %v1077 = vcombine.high %v845, %v845
        %v1079 = vunpack.c.l.s4 1966171168
        %v1080 = vunpack.c.0.s8 %v1079
        %v1081 = vlaneseq
        %v1082 = vshrl.u32 %v1081, 7
        %v1083 = vsub.s32 %v1080, %v1082
        %v1084 = vrot.slane %v845, %v1083
        %v1086 = vunpack.c.l.s4 1966171168
        %v1087 = vunpack.c.0.s8 %v1086
        %v1088 = vlaneseq
        %v1089 = vshrl.u32 %v1088, 7
        %v1090 = vsub.s32 %v1087, %v1089
        %v1091 = vrot.slane %v1077, %v1090
        %v1092 = vcombine.high %v1084, %v1084
        %v1093 = vcombine.high %v1091, %v1091
        %v1095 = vunpack.c.l.s4 1966171168
        %v1096 = vunpack.c.0.s8 %v1095
        %v1097 = vlaneseq
        %v1098 = vshrl.u32 %v1097, 7
        %v1099 = vsub.s32 %v1096, %v1098
        %v1100 = vrot.slane %v1084, %v1099
        %v1102 = vunpack.c.l.s4 1966171168
        %v1103 = vunpack.c.0.s8 %v1102
        %v1104 = vlaneseq
        %v1105 = vshrl.u32 %v1104, 7
        %v1106 = vsub.s32 %v1103, %v1105
        %v1107 = vrot.slane %v1091, %v1106
        %v1109 = vunpack.c.l.s4 1966171168
        %v1110 = vunpack.c.0.s8 %v1109
        %v1111 = vlaneseq
        %v1112 = vshrl.u32 %v1111, 7
        %v1113 = vsub.s32 %v1110, %v1112
        %v1114 = vrot.slane %v1092, %v1113
        %v1116 = vunpack.c.l.s4 1966171168
        %v1117 = vunpack.c.0.s8 %v1116
        %v1118 = vlaneseq
        %v1119 = vshrl.u32 %v1118, 7
        %v1120 = vsub.s32 %v1117, %v1119
        %v1121 = vrot.slane %v1093, %v1120
        %v1122 = vcombine.high %v1100, %v1100
        %v1123 = vcombine.high %v1107, %v1107
        %v1124 = vcombine.high %v1114, %v1114
        %v1125 = vcombine.high %v1121, %v1121
        %v1126 = vlaneseq
        %v1127 = vshrl.u32 %v1126, 7
        %v1128 = vsub.s32 0, %v1127
        %v1129 = vrot.slane %v1100, %v1128
        %v1130 = vlaneseq
        %v1131 = vshrl.u32 %v1130, 7
        %v1132 = vsub.s32 0, %v1131
        %v1133 = vrot.slane %v1114, %v1132
        %v1134 = vlaneseq
        %v1135 = vshrl.u32 %v1134, 7
        %v1136 = vsub.s32 0, %v1135
        %v1137 = vrot.slane %v1122, %v1136
        %v1138 = vlaneseq
        %v1139 = vshrl.u32 %v1138, 7
        %v1140 = vsub.s32 0, %v1139
        %v1141 = vrot.slane %v1124, %v1140
        %v1142 = vlaneseq
        %v1143 = vshrl.u32 %v1142, 7
        %v1144 = vsub.s32 0, %v1143
        %v1145 = vrot.slane %v1107, %v1144
        %v1146 = vlaneseq
        %v1147 = vshrl.u32 %v1146, 7
        %v1148 = vsub.s32 0, %v1147
        %v1149 = vrot.slane %v1121, %v1148
        %v1150 = vlaneseq
        %v1151 = vshrl.u32 %v1150, 7
        %v1152 = vsub.s32 0, %v1151
        %v1153 = vrot.slane %v1123, %v1152
        %v1154 = vlaneseq
        %v1155 = vshrl.u32 %v1154, 7
        %v1156 = vsub.s32 0, %v1155
        %v1157 = vrot.slane %v1125, %v1156
        %v1166 = vmul.f32 %v994, %v1129
        %v1167 = vmul.f32 %v998, %v1129
        %v1168 = vmul.f32 %v1005, %v1133
        %v1169 = vmul.f32 %v1009, %v1133
        %v1170 = vmul.f32 %v1016, %v1137
        %v1171 = vmul.f32 %v1020, %v1137
        %v1172 = vmul.f32 %v1027, %v1141
        %v1173 = vmul.f32 %v1031, %v1141
        %v1174 = vmul.f32 %v1038, %v1145
        %v1175 = vmul.f32 %v1042, %v1145
        %v1176 = vmul.f32 %v1049, %v1149
        %v1177 = vmul.f32 %v1053, %v1149
        %v1178 = vmul.f32 %v1060, %v1153
        %v1179 = vmul.f32 %v1064, %v1153
        %v1180 = vmul.f32 %v1071, %v1157
        %v1181 = vmul.f32 %v1075, %v1157
        %v1182 = vlaneseq
        %v1183 = vshrl.u32 %v1182, 7
        %v1184 = vsub.s32 0, %v1183
        %v1185 = vrot.slane %v849, %v1184
        %1187 = vbcast.lane.b32.xlu0 %v1185, 256
        %v1188 = vpop.permute.xlu0 %1187
        %s1190 = sor.u32 256, 8
        %1191 = vbcast.lane.b32.xlu0 %v1185, %s1190
        %v1192 = vpop.permute.xlu0 %1191
        %v1193 = vlaneseq
        %v1194 = vshrl.u32 %v1193, 7
        %v1195 = vsub.s32 1, %v1194
        %v1196 = vrot.slane %v849, %v1195
        %1198 = vbcast.lane.b32.xlu0 %v1196, 256
        %v1199 = vpop.permute.xlu0 %1198
        %s1201 = sor.u32 256, 8
        %1202 = vbcast.lane.b32.xlu0 %v1196, %s1201
        %v1203 = vpop.permute.xlu0 %1202
        %v1204 = vlaneseq
        %v1205 = vshrl.u32 %v1204, 7
        %v1206 = vsub.s32 2, %v1205
        %v1207 = vrot.slane %v849, %v1206
        %1209 = vbcast.lane.b32.xlu0 %v1207, 256
        %v1210 = vpop.permute.xlu0 %1209
        %s1212 = sor.u32 256, 8
        %1213 = vbcast.lane.b32.xlu0 %v1207, %s1212
        %v1214 = vpop.permute.xlu0 %1213
        %v1215 = vlaneseq
        %v1216 = vshrl.u32 %v1215, 7
        %v1217 = vsub.s32 3, %v1216
        %v1218 = vrot.slane %v849, %v1217
        %1220 = vbcast.lane.b32.xlu0 %v1218, 256
        %v1221 = vpop.permute.xlu0 %1220
        %s1223 = sor.u32 256, 8
        %1224 = vbcast.lane.b32.xlu0 %v1218, %s1223
        %v1225 = vpop.permute.xlu0 %1224
        %v1226 = vlaneseq
        %v1227 = vshrl.u32 %v1226, 7
        %v1228 = vsub.s32 4, %v1227
        %v1229 = vrot.slane %v849, %v1228
        %1231 = vbcast.lane.b32.xlu0 %v1229, 256
        %v1232 = vpop.permute.xlu0 %1231
        %s1234 = sor.u32 256, 8
        %1235 = vbcast.lane.b32.xlu0 %v1229, %s1234
        %v1236 = vpop.permute.xlu0 %1235
        %v1237 = vlaneseq
        %v1238 = vshrl.u32 %v1237, 7
        %v1239 = vsub.s32 5, %v1238
        %v1240 = vrot.slane %v849, %v1239
        %1242 = vbcast.lane.b32.xlu0 %v1240, 256
        %v1243 = vpop.permute.xlu0 %1242
        %s1245 = sor.u32 256, 8
        %1246 = vbcast.lane.b32.xlu0 %v1240, %s1245
        %v1247 = vpop.permute.xlu0 %1246
        %v1248 = vlaneseq
        %v1249 = vshrl.u32 %v1248, 7
        %v1250 = vsub.s32 6, %v1249
        %v1251 = vrot.slane %v849, %v1250
        %1253 = vbcast.lane.b32.xlu0 %v1251, 256
        %v1254 = vpop.permute.xlu0 %1253
        %s1256 = sor.u32 256, 8
        %1257 = vbcast.lane.b32.xlu0 %v1251, %s1256
        %v1258 = vpop.permute.xlu0 %1257
        %v1259 = vlaneseq
        %v1260 = vshrl.u32 %v1259, 7
        %v1261 = vsub.s32 7, %v1260
        %v1262 = vrot.slane %v849, %v1261
        %1264 = vbcast.lane.b32.xlu0 %v1262, 256
        %v1265 = vpop.permute.xlu0 %1264
        %s1267 = sor.u32 256, 8
        %1268 = vbcast.lane.b32.xlu0 %v1262, %s1267
        %v1269 = vpop.permute.xlu0 %1268
        %v1270 = vld [vmem:[#allocation7] sm:$0xff]
        %v1271 = vld [vmem:[#allocation7 + $0x8] sm:$0xff]
        %v1272 = vmul.f32 %v957, %v1270
        %v1273 = vmul.f32 %v959, %v1271
        %v1274 = vadd.f32 %v1272, %v1166
        %v1275 = vadd.f32 %v1273, %v1167
        %v1276 = vmul.f32 %v1188, %v1274
        %v1277 = vmul.f32 %v1192, %v1275
        %v1278 = vsel %vm684, %v1276, 0.0
        %v1279 = vsel %vm684, %v1277, 0.0
        %v1280 = vadd.f32 %v1278, %v1279
        %v1281 = vrot.slane %v1280, 4
        %v1282 = vadd.f32 %v1280, %v1281
        %v1283 = vrot.slane %v1282, 2
        %v1284 = vadd.f32 %v1282, %v1283
        %v1285 = vrot.slane %v1284, 1
        %v1286 = vadd.f32 %v1284, %v1285
        %v1287 = vmul.f32 %v961, %v1274
        %v1288 = vmul.f32 %v963, %v1275
        %v1289 = vadd.f32 %v1287, %v1168
        %v1290 = vadd.f32 %v1288, %v1169
        %v1291 = vmul.f32 %v1199, %v1289
        %v1292 = vmul.f32 %v1203, %v1290
        %v1293 = vsel %vm684, %v1291, 0.0
        %v1294 = vsel %vm684, %v1292, 0.0
        %v1295 = vadd.f32 %v1293, %v1294
        %v1296 = vrot.slane %v1295, 4
        %v1297 = vadd.f32 %v1295, %v1296
        %v1298 = vrot.slane %v1297, 2
        %v1299 = vadd.f32 %v1297, %v1298
        %v1300 = vrot.slane %v1299, 1
        %v1301 = vadd.f32 %v1299, %v1300
        %v1302 = vmul.f32 %v965, %v1289
        %v1303 = vmul.f32 %v967, %v1290
        %v1304 = vadd.f32 %v1302, %v1170
        %v1305 = vadd.f32 %v1303, %v1171
        %v1306 = vmul.f32 %v1210, %v1304
        %v1307 = vmul.f32 %v1214, %v1305
        %v1308 = vsel %vm684, %v1306, 0.0
        %v1309 = vsel %vm684, %v1307, 0.0
        %v1310 = vadd.f32 %v1308, %v1309
        %v1311 = vrot.slane %v1310, 4
        %v1312 = vadd.f32 %v1310, %v1311
        %v1313 = vrot.slane %v1312, 2
        %v1314 = vadd.f32 %v1312, %v1313
        %v1315 = vrot.slane %v1314, 1
        %v1316 = vadd.f32 %v1314, %v1315
        %v1317 = vmul.f32 %v969, %v1304
        %v1318 = vmul.f32 %v971, %v1305
        %v1319 = vadd.f32 %v1317, %v1172
        %v1320 = vadd.f32 %v1318, %v1173
        %v1321 = vmul.f32 %v1221, %v1319
        %v1322 = vmul.f32 %v1225, %v1320
        %v1323 = vsel %vm684, %v1321, 0.0
        %v1324 = vsel %vm684, %v1322, 0.0
        %v1325 = vadd.f32 %v1323, %v1324
        %v1326 = vrot.slane %v1325, 4
        %v1327 = vadd.f32 %v1325, %v1326
        %v1328 = vrot.slane %v1327, 2
        %v1329 = vadd.f32 %v1327, %v1328
        %v1330 = vrot.slane %v1329, 1
        %v1331 = vadd.f32 %v1329, %v1330
        %v1332 = vmul.f32 %v973, %v1319
        %v1333 = vmul.f32 %v975, %v1320
        %v1334 = vadd.f32 %v1332, %v1174
        %v1335 = vadd.f32 %v1333, %v1175
        %v1336 = vmul.f32 %v1232, %v1334
        %v1337 = vmul.f32 %v1236, %v1335
        %v1338 = vsel %vm684, %v1336, 0.0
        %v1339 = vsel %vm684, %v1337, 0.0
        %v1340 = vadd.f32 %v1338, %v1339
        %v1341 = vrot.slane %v1340, 4
        %v1342 = vadd.f32 %v1340, %v1341
        %v1343 = vrot.slane %v1342, 2
        %v1344 = vadd.f32 %v1342, %v1343
        %v1345 = vrot.slane %v1344, 1
        %v1346 = vadd.f32 %v1344, %v1345
        %v1347 = vmul.f32 %v977, %v1334
        %v1348 = vmul.f32 %v979, %v1335
        %v1349 = vadd.f32 %v1347, %v1176
        %v1350 = vadd.f32 %v1348, %v1177
        %v1351 = vmul.f32 %v1243, %v1349
        %v1352 = vmul.f32 %v1247, %v1350
        %v1353 = vsel %vm684, %v1351, 0.0
        %v1354 = vsel %vm684, %v1352, 0.0
        %v1355 = vadd.f32 %v1353, %v1354
        %v1356 = vrot.slane %v1355, 4
        %v1357 = vadd.f32 %v1355, %v1356
        %v1358 = vrot.slane %v1357, 2
        %v1359 = vadd.f32 %v1357, %v1358
        %v1360 = vrot.slane %v1359, 1
        %v1361 = vadd.f32 %v1359, %v1360
        %v1362 = vmul.f32 %v981, %v1349
        %v1363 = vmul.f32 %v983, %v1350
        %v1364 = vadd.f32 %v1362, %v1178
        %v1365 = vadd.f32 %v1363, %v1179
        %v1366 = vmul.f32 %v1254, %v1364
        %v1367 = vmul.f32 %v1258, %v1365
        %v1368 = vsel %vm684, %v1366, 0.0
        %v1369 = vsel %vm684, %v1367, 0.0
        %v1370 = vadd.f32 %v1368, %v1369
        %v1371 = vrot.slane %v1370, 4
        %v1372 = vadd.f32 %v1370, %v1371
        %v1373 = vrot.slane %v1372, 2
        %v1374 = vadd.f32 %v1372, %v1373
        %v1375 = vrot.slane %v1374, 1
        %v1376 = vadd.f32 %v1374, %v1375
        %v1377 = vmul.f32 %v985, %v1364
        %v1378 = vmul.f32 %v987, %v1365
        %v1379 = vadd.f32 %v1377, %v1180
        %v1380 = vadd.f32 %v1378, %v1181
        %v1381 = vmul.f32 %v1265, %v1379
        %v1382 = vmul.f32 %v1269, %v1380
        %v1383 = vsel %vm684, %v1381, 0.0
        %v1384 = vsel %vm684, %v1382, 0.0
        %v1385 = vadd.f32 %v1383, %v1384
        %v1386 = vrot.slane %v1385, 4
        %v1387 = vadd.f32 %v1385, %v1386
        %v1388 = vrot.slane %v1387, 2
        %v1389 = vadd.f32 %v1387, %v1388
        %v1390 = vrot.slane %v1389, 1
        %v1391 = vadd.f32 %v1389, %v1390
        %1392 = vst.msk [vmem:[#allocation7] sm:$0xff] %vm684, %v1379
        %1393 = vst.msk [vmem:[#allocation7 + $0x8] sm:$0xff] %vm684, %v1380
        %v1394 = vsel %vm580, %v1286, %v1301
        %v1395 = vsel %vm596, %v1394, %v1316
        %v1396 = vsel %vm612, %v1395, %v1331
        %vm1397 = vcmask 1043456
        %v1398 = vsel %vm1397, %v1396, %v1346
        %vm1399 = vcmask 1044480
        %v1400 = vsel %vm1399, %v1398, %v1361
        %vm1401 = vcmask 1045504
        %v1402 = vsel %vm1401, %v1400, %v1376
        %vm1403 = vcmask 1046528
        %v1404 = vsel %vm1403, %v1402, %v1391
        %s1405 = scalar_lea.vmem [#allocation6], %s841
        %1406 = vst.msk [vmem:[%s1405] sm:$0xff] %vm684, %v1404
      $region73: #{mamba_lm_forward.4} parent=67 // loop_footer
        %s840 = sadd.s32 1, %s836
      $region74: #{mamba_lm_forward.4} parent=67 // loop_footer_branch
        %835 = sbr.rel target = $region70
      $region75: #{mamba_lm_forward.4} parent=67 // loop_exit
        _
      %v1407 = vld [vmem:[#allocation6] sm:$0xff]
      %v1408 = vld [vmem:[#allocation6 + $0x8] sm:$0xff]
      %v1409 = vld [vmem:[%s10] sm:$0x1]
      %v1411 = vlaneseq
      %v1412 = vshrl.u32 %v1411, 7
      %v1413 = vsub.s32 0, %v1412
      %v1414 = vrot.slane %v1409, %v1413
      %v1416 = vmul.f32 %v1414, %v649
      %v1417 = vmul.f32 %v1414, %v650
      %v1418 = vadd.f32 %v1407, %v1416
      %v1419 = vadd.f32 %v1408, %v1417
      %v1420 = vsub.f32 0.0, %v565
      %v1421 = vsub.f32 0.0, %v568
      %v1422 = vmul.f32 %v1420, 1.442695
      %v1423 = vpow.pop %v1422
      %v1424 = vmul.f32 %v1421, 1.442695
      %v1425 = vpow.pop %v1424
      %v1426 = vadd.f32 %v1423, 1.0
      %v1427 = vadd.f32 %v1425, 1.0
      %v1428 = vrcp.pop %v1426
      %v1429 = vmul.f32 1.0, %v1428
      %v1430 = vrcp.pop %v1427
      %v1431 = vmul.f32 1.0, %v1430
      %v1432 = vmul.f32 %v565, %v1429
      %v1433 = vmul.f32 %v568, %v1431
      %1436 = vrot.lane.b32.xlu0 %v1432, 64
      %v1437 = vpop.permute.xlu0 %1436
      %1438 = vrot.lane.b32.xlu0 %v1433, 64
      %v1439 = vpop.permute.xlu0 %1438
      %v1442 = vmul.f32 %v1418, %v1437
      %v1443 = vmul.f32 %v1419, %v1439
      %v1444 = vpack.c.bf16 %v1443, %v1442
      %v1445 = vld [vmem:[%s11] sm:$0xf]
      %v1446 = vld [vmem:[%s11 + $0x4] sm:$0xf]
      %v1447 = vld [vmem:[%s11 + $0x8] sm:$0xf]
      %v1448 = vld [vmem:[%s11 + $0xc] sm:$0xf]
      %v1449 = vld [vmem:[%s11 + $0x10] sm:$0xf]
      %v1450 = vld [vmem:[%s11 + $0x14] sm:$0xf]
      %v1451 = vld [vmem:[%s11 + $0x18] sm:$0xf]
      %v1452 = vld [vmem:[%s11 + $0x1c] sm:$0xf]
      %v1461 = vunpack.c.l.b16 %v1445
      %v1462 = vunpack.c.l.b16 %v1446
      %v1463 = vunpack.c.l.b16 %v1447
      %v1464 = vunpack.c.l.b16 %v1448
      %v1465 = vunpack.c.l.b16 %v1449
      %v1466 = vunpack.c.l.b16 %v1450
      %v1467 = vunpack.c.l.b16 %v1451
      %v1468 = vunpack.c.l.b16 %v1452
      %v1469 = vpack.c.b16 %v1462, %v1461
      %v1470 = vpack.c.b16 %v1464, %v1463
      %v1471 = vpack.c.b16 %v1466, %v1465
      %v1472 = vpack.c.b16 %v1468, %v1467
      %v1478 = vsel %vm684, %v1444, 0
      %1480 = vmatprep.subr.bf16.mxu0 0
      %1481 = vmatpush1.bf16.msra.mxu0 %v1469
      %1482 = vmatprep.subr.bf16.mxu0 0
      %1483 = vmatpush1.bf16.msra.mxu0 %v1470
      %1484 = vmatprep.subr.bf16.mxu0 0
      %1485 = vmatpush1.bf16.msra.mxu0 %v1471
      %1486 = vmatprep.subr.bf16.mxu0 0
      %1487 = vmatpush1.bf16.msra.mxu0 %v1472
      %1488 = vmatprep.subr.bf16.mxu0 0
      %1489 = vmatpush1.bf16.msra.mxu0 0
      %1490 = vmatprep.subr.bf16.mxu0 0
      %1491 = vmatpush1.bf16.msra.mxu0 0
      %1492 = vmatprep.subr.bf16.mxu0 0
      %1493 = vmatpush1.bf16.msra.mxu0 0
      %1494 = vmatprep.subr.bf16.mxu0 0
      %1495 = vmatpush1.bf16.msra.mxu0 0
      %1496 = vmatprep.subr.bf16.mxu0 0
      %1497 = vmatpush1.bf16.msra.mxu0 0
      %1498 = vmatprep.subr.bf16.mxu0 0
      %1499 = vmatpush1.bf16.msra.mxu0 0
      %1500 = vmatprep.subr.bf16.mxu0 0
      %1501 = vmatpush1.bf16.msra.mxu0 0
      %1502 = vmatprep.subr.bf16.mxu0 0
      %1503 = vmatpush1.bf16.msra.mxu0 0
      %1504 = vmatprep.subr.bf16.mxu0 0
      %1505 = vmatpush1.bf16.msra.mxu0 0
      %1506 = vmatprep.subr.bf16.mxu0 0
      %1507 = vmatpush1.bf16.msra.mxu0 0
      %1508 = vmatprep.subr.bf16.mxu0 0
      %1509 = vmatpush1.bf16.msra.mxu0 0
      %1510 = vmatprep.subr.bf16.mxu0 0
      %1511 = vmatpush1.bf16.msra.mxu0 0
      %1512 = vmatprep.mubr.bf16.mxu0 0
      %1513 = vmatmul.mubr.bf16.gmra.mrb[0].mxu0 %v1478
      %v1514 = vpop.f32.mrb[0].mxu0
      %v1515 = vadd.f32 0.0, %v1514
      %v1516 = vpop.f32.mrb[0].mxu0
      %v1517 = vpop.f32.mrb[0].mxu0
      %v1518 = vadd.f32 0.0, %v1517
      %v1519 = vpop.f32.mrb[0].mxu0
      %1520 = vdwg.mxu0
      %1521 = vst.msk [vmem:[%s468] sm:$0xff] %vm481, %v1515
      %1522 = vst.msk [vmem:[%s468 + $0x8] sm:$0xff] %vm481, %v1518
      %p1523 = scmp.lt.s32.totalorder %s25, 1
      %s1524 = scalar_select %p1523, %s25, 1
      %s1525 = smul.addr %s1524, 2
      %s1526 = smul.addr %s1525, 8
      %s1527 = scalar_lea.vmem %s12, %s1526
      %p1528 = scmp.lt.s32.totalorder %s25, 1
      %s1529 = scalar_select %p1528, %s25, 1
      %s1530 = smul.addr %s1529, 2
      %s1531 = smul.addr %s1530, 8
      %s1532 = scalar_lea.vmem %s13, %s1531
      // Predicated region
      $region76: #{mamba_lm_forward.4} parent=67 // pred_check
        %p1533 = pneg %p305
      $region77: #{mamba_lm_forward.4} parent=67 // pred_check_branch
        %1535 = sbr.rel (%p1533) target = $region79
      $region78: #{mamba_lm_forward.4} parent=67 // pred_region
        _
      $region79: #{mamba_lm_forward.4} parent=67 // pred_fallthru
        _
      // Predicated region
      $region80: #{mamba_lm_forward.4} parent=67 // pred_check
        %p1536 = pneg %p331
      $region81: #{mamba_lm_forward.4} parent=67 // pred_check_branch
        %1538 = sbr.rel (%p1536) target = $region83
      $region82: #{mamba_lm_forward.4} parent=67 // pred_region
        _
      $region83: #{mamba_lm_forward.4} parent=67 // pred_fallthru
        _
    $region68: #{mamba_lm_forward.4} parent=5 // pred_fallthru
      _
    %p1539 = scmp.le.s32.totalorder 2, %s20
    // Predicated region
    $region84: #{mamba_lm_forward.4} parent=5 // pred_check
      %p1540 = pneg %p1539
    $region85: #{mamba_lm_forward.4} parent=5 // pred_check_branch
      %1542 = sbr.rel (%p1540) target = $region87
    $region86: #{mamba_lm_forward.4} parent=5 // pred_region
      %s1543 = ssub.s32 %s20, 2
      // Predicated region
      $region88: #{mamba_lm_forward.4} parent=86 // pred_check
        %p1544 = pneg %p311
      $region89: #{mamba_lm_forward.4} parent=86 // pred_check_branch
        %1546 = sbr.rel (%p1544) target = $region91
      $region90: #{mamba_lm_forward.4} parent=86 // pred_region
        %p1547 = scmp.lt.s32.totalorder %s26, 1
        %s1548 = scalar_select %p1547, %s26, 1
        %s1549 = smul.addr %s1548, 2
        %s1550 = smul.addr %s1549, 8
        %s1551 = scalar_lea.vmem %s12, %s1550
      $region91: #{mamba_lm_forward.4} parent=86 // pred_fallthru
        _
      // Predicated region
      $region92: #{mamba_lm_forward.4} parent=86 // pred_check
        %p1552 = pneg %p337
      $region93: #{mamba_lm_forward.4} parent=86 // pred_check_branch
        %1554 = sbr.rel (%p1552) target = $region95
      $region94: #{mamba_lm_forward.4} parent=86 // pred_region
        %p1555 = scmp.lt.s32.totalorder %s26, 1
        %s1556 = scalar_select %p1555, %s26, 1
        %s1557 = smul.addr %s1556, 2
        %s1558 = smul.addr %s1557, 8
        %s1559 = scalar_lea.vmem %s13, %s1558
      $region95: #{mamba_lm_forward.4} parent=86 // pred_fallthru
        _
    $region87: #{mamba_lm_forward.4} parent=5 // pred_fallthru
      _
  $region6: #{mamba_lm_forward.4} parent=0 // loop_footer
    %s24 = sadd.s32 1, %s20
  $region7: #{mamba_lm_forward.4} parent=0 // loop_footer_branch
    %19 = sbr.rel target = $region3
  $region8: #{mamba_lm_forward.4} parent=0 // loop_exit
    _

</llo_original>
